<compile_context>
chip_gen: v7x
topology: tpu7x:2x2x1
jax: 0.10.0
libtpu: 0.0.40
codegen_flags: <defaults>
</compile_context>

<pallas_src>
import math

import jax
import jax.numpy as jnp
from jax.experimental import pallas as pl
from jax.experimental.pallas import tpu as pltpu

LN_EPS = 1e-5  # PyTorch nn.LayerNorm default


def _layer_norm(x, gamma, beta):
    mean = jnp.mean(x, axis=-1, keepdims=True)
    var = jnp.mean(jnp.square(x - mean), axis=-1, keepdims=True)
    return (x - mean) * jax.lax.rsqrt(var + LN_EPS) * gamma + beta


def _size_bytes(a):
    return math.prod(a.shape) * jnp.dtype(a.dtype).itemsize


def _vmem_limit(block_bytes):
    # footprint + 25% headroom + 4 MiB slack, clamped to sane bounds (<= 48 MiB
    # so it also fits under v7x's 64 MiB physical VMEM).
    need = int(1.25 * block_bytes) + (4 << 20)
    return max(16 << 20, min(need, 48 << 20))


# ---------------------------------------------------------------------------
# Kernel 1: stem MLP + layer-streamed transformer + first point_gen linear.
# Grid: (num_layers,), "arbitrary".  h is carried across layers in VMEM scratch.
# ---------------------------------------------------------------------------
def _decoder_body_kernel(
    x_ref, mlp_w1_ref, mlp_b1_ref, mlp_w2_ref, mlp_b2_ref,
    wvo_ref, bvo_ref, lin1_w_ref, lin1_b_ref, lin2_w_ref, lin2_b_ref,
    ln1_g_ref, ln1_b_ref, ln2_g_ref, ln2_b_ref,
    pg_w1_ref, pg_b1_ref,
    p_ref, h_scr,
):
    l = pl.program_id(0)

    @pl.when(l == 0)
    def _stem():
        x = x_ref[...]
        h = jnp.maximum(
            jnp.dot(x, mlp_w1_ref[...].astype(jnp.float32),
                    preferred_element_type=jnp.float32) + mlp_b1_ref[...], 0.0)
        h = jnp.maximum(
            jnp.dot(h, mlp_w2_ref[...].astype(jnp.float32),
                    preferred_element_type=jnp.float32) + mlp_b2_ref[...], 0.0)
        h_scr[...] = h

    h = h_scr[...]

    # Self-attention with seq_len == 1, folded: h @ (Wv@Wo) + (bv@Wo + bo).
    attn = (jnp.dot(h, wvo_ref[0].astype(jnp.float32),
                    preferred_element_type=jnp.float32) + bvo_ref[0])
    h = _layer_norm(h + attn, ln1_g_ref[0], ln1_b_ref[0])

    # Feed-forward: linear1 -> ReLU -> linear2 (post-norm residual).
    ff = jnp.maximum(
        jnp.dot(h, lin1_w_ref[0].astype(jnp.float32),
                preferred_element_type=jnp.float32) + lin1_b_ref[0], 0.0)
    ff = (jnp.dot(ff, lin2_w_ref[0].astype(jnp.float32),
                  preferred_element_type=jnp.float32) + lin2_b_ref[0])
    h = _layer_norm(h + ff, ln2_g_ref[0], ln2_b_ref[0])
    h_scr[...] = h

    @pl.when(l == pl.num_programs(0) - 1)
    def _point_gen_hidden():
        p = jnp.maximum(
            jnp.dot(h, pg_w1_ref[...].astype(jnp.float32),
                    preferred_element_type=jnp.float32) + pg_b1_ref[...], 0.0)
        p_ref[...] = p


# ---------------------------------------------------------------------------
# Kernel 2: point_gen output matmul, tiled over the output (lane) dimension.
# Grid: (out_dim // tile_n,), "parallel" (sharded across v7x's 2 TensorCores).
# ---------------------------------------------------------------------------
def _point_gen_out_kernel(p_ref, w2_ref, b2_ref, out_ref):
    out_ref[...] = (
        jnp.dot(p_ref[...], w2_ref[...].astype(jnp.float32),
                preferred_element_type=jnp.float32) + b2_ref[...]
    ).astype(out_ref.dtype)


def _pick_tile_n(out_dim, max_tile=512):
    """Largest multiple-of-128 divisor of out_dim that is <= max_tile."""
    best = out_dim
    t = 128
    while t <= min(max_tile, out_dim):
        if out_dim % t == 0:
            best = t
        t += 128
    return best if (best <= max_tile or best == out_dim) else out_dim


def glasses_decoder_forward(x, P):
    """Pallas wrapper. x: (B, latent_dim) f32 -> (B, num_points, 3) f32."""
    B = x.shape[0]
    L = P["num_layers"]
    d_model, d_ff = P["d_model"], P["d_ff"]
    pg_hidden = P["pg_hidden"]
    num_points = P["num_points"]
    out_dim = 3 * num_points

    # ---- call 1: stem + transformer (layer-streamed) + point_gen hidden ----
    args1 = (
        x,
        P["mlp_w1"], P["mlp_b1"], P["mlp_w2"], P["mlp_b2"],
        P["wvo"], P["bvo"],
        P["lin1_w"], P["lin1_b"], P["lin2_w"], P["lin2_b"],
        P["ln1_g"], P["ln1_b"], P["ln2_g"], P["ln2_b"],
        P["pg_w1"], P["pg_b1"],
    )

    def const_spec(a):          # whole array resident, fetched once
        return pl.BlockSpec(a.shape, lambda l, _n=a.ndim: (0,) * _n)

    def layer_spec(a):          # one layer's slice per grid step
        return pl.BlockSpec((1,) + a.shape[1:],
                            lambda l, _n=a.ndim: (l,) + (0,) * (_n - 1))

    in_specs1 = [
        const_spec(x),
        const_spec(P["mlp_w1"]), const_spec(P["mlp_b1"]),
        const_spec(P["mlp_w2"]), const_spec(P["mlp_b2"]),
        layer_spec(P["wvo"]), layer_spec(P["bvo"]),
        layer_spec(P["lin1_w"]), layer_spec(P["lin1_b"]),
        layer_spec(P["lin2_w"]), layer_spec(P["lin2_b"]),
        layer_spec(P["ln1_g"]), layer_spec(P["ln1_b"]),
        layer_spec(P["ln2_g"]), layer_spec(P["ln2_b"]),
        const_spec(P["pg_w1"]), const_spec(P["pg_b1"]),
    ]

    resident = (x, P["mlp_w1"], P["mlp_b1"], P["mlp_w2"], P["mlp_b2"],
                P["pg_w1"], P["pg_b1"])
    streamed = (P["wvo"], P["bvo"], P["lin1_w"], P["lin1_b"], P["lin2_w"],
                P["lin2_b"], P["ln1_g"], P["ln1_b"], P["ln2_g"], P["ln2_b"])
    block_bytes1 = (sum(_size_bytes(a) for a in resident)
                    + 2 * sum(_size_bytes(a) // L for a in streamed)  # dbl-buf
                    + 4 * B * (pg_hidden + d_model))                  # out+scratch

    p_hidden = pl.pallas_call(
        _decoder_body_kernel,
        out_shape=jax.ShapeDtypeStruct((B, pg_hidden), jnp.float32),
        grid=(L,),
        in_specs=in_specs1,
        out_specs=pl.BlockSpec((B, pg_hidden), lambda l: (0, 0)),
        scratch_shapes=[pltpu.VMEM((B, d_model), jnp.float32)],
        compiler_params=pltpu.CompilerParams(
            dimension_semantics=("arbitrary",),
            vmem_limit_bytes=_vmem_limit(block_bytes1)),
    )(*args1)

    # ---- call 2: point_gen output matmul, lane-tiled, parallel grid --------
    tile_n = _pick_tile_n(out_dim)
    n_tiles = out_dim // tile_n

    block_bytes2 = (B * pg_hidden * 4 + B * tile_n * 4        # p + out tile
                    + 2 * (pg_hidden * tile_n * 2 + tile_n * 4))  # w2/b2, dbl-buf

    flat = pl.pallas_call(
        _point_gen_out_kernel,
        out_shape=jax.ShapeDtypeStruct((B, out_dim), jnp.float32),
        grid=(n_tiles,),
        in_specs=[
            pl.BlockSpec((B, pg_hidden), lambda t: (0, 0)),
            pl.BlockSpec((pg_hidden, tile_n), lambda t: (0, t)),
            pl.BlockSpec((1, tile_n), lambda t: (0, t)),
        ],
        out_specs=pl.BlockSpec((B, tile_n), lambda t: (0, t)),
        compiler_params=pltpu.CompilerParams(
            dimension_semantics=("parallel",),
            vmem_limit_bytes=_vmem_limit(block_bytes2)),
    )(p_hidden, P["pg_w2"], P["pg_b2"])

    # equivalent to points.view(-1, num_points, 3)
    return flat.reshape(-1, num_points, 3)


# ---------------------------------------------------------------------------
# Deterministic synthetic parameters (no checkpoint loading).
# Large matrices are stored as bf16 (the streamed format); biases / LayerNorm
# params are f32.  The seq-1 attention fold (wvo / bvo) is precomputed here.
# ---------------------------------------------------------------------------
def init_params(key, *, latent_dim, d_model, d_ff, pg_hidden, num_points,
                num_layers, nhead):
    keys = iter(jax.random.split(key, 32))
    s = 0.05

    def w32(shape):
        return s * jax.random.normal(next(keys), shape, dtype=jnp.float32)

    def w16(shape):
        return w32(shape).astype(jnp.bfloat16)

    # transformer attention weights (in_proj = [Wq^T | Wk^T | Wv^T])
    in_proj_w = w16((num_layers, d_model, 3 * d_model))
    in_proj_b = w32((num_layers, 3 * d_model))
    wo = w16((num_layers, d_model, d_model))
    bo = w32((num_layers, d_model))

    # fold the seq_len==1 attention:  attn = h @ (Wv@Wo) + (bv@Wo + bo)
    wv32 = in_proj_w[:, :, 2 * d_model:].astype(jnp.float32)
    wo32 = wo.astype(jnp.float32)
    wvo = jnp.einsum("lij,ljk->lik", wv32, wo32).astype(jnp.bfloat16)
    bv = in_proj_b[:, 2 * d_model:]
    bvo = (jnp.einsum("li,lik->lk", bv, wo32) + bo)[:, None, :]  # (L,1,d) f32

    return dict(
        latent_dim=latent_dim, d_model=d_model, d_ff=d_ff, pg_hidden=pg_hidden,
        num_points=num_points, num_layers=num_layers, nhead=nhead,
        # stem MLP
        mlp_w1=w16((latent_dim, d_model)), mlp_b1=w32((1, d_model)),
        mlp_w2=w16((d_model, d_model)), mlp_b2=w32((1, d_model)),
        # transformer (reference view + folded kernel view)
        in_proj_w=in_proj_w, in_proj_b=in_proj_b, wo=wo, bo=bo,
        wvo=wvo, bvo=bvo,
        lin1_w=w16((num_layers, d_model, d_ff)),
        lin1_b=w32((num_layers, 1, d_ff)),
        lin2_w=w16((num_layers, d_ff, d_model)),
        lin2_b=w32((num_layers, 1, d_model)),
        ln1_g=jnp.ones((num_layers, 1, d_model), jnp.float32),
        ln1_b=jnp.zeros((num_layers, 1, d_model), jnp.float32),
        ln2_g=jnp.ones((num_layers, 1, d_model), jnp.float32),
        ln2_b=jnp.zeros((num_layers, 1, d_model), jnp.float32),
        # point_gen
        pg_w1=w16((d_model, pg_hidden)), pg_b1=w32((1, pg_hidden)),
        pg_w2=w16((pg_hidden, 3 * num_points)), pg_b2=w32((1, 3 * num_points)),
    )


# ---------------------------------------------------------------------------
# Pure-JAX reference: full (unfused, multi-head) attention path, f32 math, same
# bf16-stored weights upcast to f32.
# ---------------------------------------------------------------------------
def reference_forward(x, P):
    d, nhead, L = P["d_model"], P["nhead"], P["num_layers"]
    hd = d // nhead
    B = x.shape[0]
    f = lambda a: a.astype(jnp.float32)

    h = jnp.maximum(x @ f(P["mlp_w1"]) + P["mlp_b1"], 0.0)
    h = jnp.maximum(h @ f(P["mlp_w2"]) + P["mlp_b2"], 0.0)

    for l in range(L):
        qkv = h @ f(P["in_proj_w"][l]) + P["in_proj_b"][l][None, :]
        q, k, v = qkv[:, :d], qkv[:, d:2 * d], qkv[:, 2 * d:]
        qh = q.reshape(B, nhead, 1, hd)
        kh = k.reshape(B, nhead, 1, hd)
        vh = v.reshape(B, nhead, 1, hd)
        scores = jnp.einsum("bnqh,bnkh->bnqk", qh, kh) / jnp.sqrt(float(hd))
        attn_w = jax.nn.softmax(scores, axis=-1)          # seq_len==1 -> all 1s
        attn = jnp.einsum("bnqk,bnkh->bnqh", attn_w, vh).reshape(B, d)
        attn = attn @ f(P["wo"][l]) + P["bo"][l][None, :]
        h = _layer_norm(h + attn, P["ln1_g"][l], P["ln1_b"][l])

        ff = jnp.maximum(h @ f(P["lin1_w"][l]) + P["lin1_b"][l], 0.0)
        ff = ff @ f(P["lin2_w"][l]) + P["lin2_b"][l]
        h = _layer_norm(h + ff, P["ln2_g"][l], P["ln2_b"][l])

    p = jnp.maximum(h @ f(P["pg_w1"]) + P["pg_b1"], 0.0)
    p = p @ f(P["pg_w2"]) + P["pg_b2"]
    return p.reshape(-1, P["num_points"], 3)


if __name__ == "__main__":
    # Small shapes consistent with the module (scaled-down hidden dims).
    # Original: latent_dim=512, d_model=1024, d_ff=2048, pg_hidden=512,
    #           num_points=2048, num_layers=3, nhead=8.
    B, LATENT, D_MODEL, D_FF, PG_HIDDEN = 2, 64, 128, 256, 64
    NUM_POINTS, NUM_LAYERS, NHEAD = 256, 3, 8   # out_dim = 768 -> 2 lane tiles

    key = jax.random.PRNGKey(0)
    k_x, k_p = jax.random.split(key)
    x = jax.random.normal(k_x, (B, LATENT), dtype=jnp.float32)
    params = init_params(k_p, latent_dim=LATENT, d_model=D_MODEL, d_ff=D_FF,
                         pg_hidden=PG_HIDDEN, num_points=NUM_POINTS,
                         num_layers=NUM_LAYERS, nhead=NHEAD)

    out = jax.block_until_ready(glasses_decoder_forward(x, params))
    ref = jax.block_until_ready(reference_forward(x, params))

    assert out.shape == (B, NUM_POINTS, 3), out.shape
    max_err = float(jnp.max(jnp.abs(out - ref)))
    # tolerance covers bf16 rounding of the host-folded Wv@Wo product
    assert jnp.allclose(out, ref, atol=2e-3, rtol=2e-3), max_err
    print("KERNEL_OK")
</pallas_src>

<mosaic_0001>
module attributes {stable_mosaic.version = 11 : i64} {
  func.func @_decoder_body_kernel(%arg0: i32, %arg1: memref<2x64xf32, #tpu.memory_space<vmem>>, %arg2: memref<64x128xbf16, #tpu.memory_space<vmem>>, %arg3: memref<1x128xf32, #tpu.memory_space<vmem>>, %arg4: memref<128x128xbf16, #tpu.memory_space<vmem>>, %arg5: memref<1x128xf32, #tpu.memory_space<vmem>>, %arg6: memref<1x128x128xbf16, #tpu.memory_space<vmem>>, %arg7: memref<1x1x128xf32, #tpu.memory_space<vmem>>, %arg8: memref<1x128x256xbf16, #tpu.memory_space<vmem>>, %arg9: memref<1x1x256xf32, #tpu.memory_space<vmem>>, %arg10: memref<1x256x128xbf16, #tpu.memory_space<vmem>>, %arg11: memref<1x1x128xf32, #tpu.memory_space<vmem>>, %arg12: memref<1x1x128xf32, #tpu.memory_space<vmem>>, %arg13: memref<1x1x128xf32, #tpu.memory_space<vmem>>, %arg14: memref<1x1x128xf32, #tpu.memory_space<vmem>>, %arg15: memref<1x1x128xf32, #tpu.memory_space<vmem>>, %arg16: memref<128x64xbf16, #tpu.memory_space<vmem>>, %arg17: memref<1x64xf32, #tpu.memory_space<vmem>>, %arg18: memref<2x64xf32, #tpu.memory_space<vmem>>, %arg19: memref<2x128xf32, #tpu.memory_space<vmem>>) attributes {dimension_semantics = [#tpu.dimension_semantics<arbitrary>], iteration_bounds = array<i64: 3>, scalar_prefetch = 0 : i64, scratch_operands = 1 : i64, tpu.core_type = #tpu.core_type<tc>, window_params = [{pipeline_mode = #tpu.pipeline_mode<synchronous>, transform_indices = @transform_0, window_bounds = array<i64: 2, 64>}, {pipeline_mode = #tpu.pipeline_mode<synchronous>, transform_indices = @transform_1, window_bounds = array<i64: 64, 128>}, {pipeline_mode = #tpu.pipeline_mode<synchronous>, transform_indices = @transform_2, window_bounds = array<i64: 1, 128>}, {pipeline_mode = #tpu.pipeline_mode<synchronous>, transform_indices = @transform_3, window_bounds = array<i64: 128, 128>}, {pipeline_mode = #tpu.pipeline_mode<synchronous>, transform_indices = @transform_4, window_bounds = array<i64: 1, 128>}, {transform_indices = @transform_5, window_bounds = array<i64: 1, 128, 128>}, {transform_indices = @transform_6, window_bounds = array<i64: 1, 1, 128>}, {transform_indices = @transform_7, window_bounds = array<i64: 1, 128, 256>}, {transform_indices = @transform_8, window_bounds = array<i64: 1, 1, 256>}, {transform_indices = @transform_9, window_bounds = array<i64: 1, 256, 128>}, {transform_indices = @transform_10, window_bounds = array<i64: 1, 1, 128>}, {transform_indices = @transform_11, window_bounds = array<i64: 1, 1, 128>}, {transform_indices = @transform_12, window_bounds = array<i64: 1, 1, 128>}, {transform_indices = @transform_13, window_bounds = array<i64: 1, 1, 128>}, {transform_indices = @transform_14, window_bounds = array<i64: 1, 1, 128>}, {pipeline_mode = #tpu.pipeline_mode<synchronous>, transform_indices = @transform_15, window_bounds = array<i64: 128, 64>}, {pipeline_mode = #tpu.pipeline_mode<synchronous>, transform_indices = @transform_16, window_bounds = array<i64: 1, 64>}, {pipeline_mode = #tpu.pipeline_mode<synchronous>, transform_indices = @transform_17, window_bounds = array<i64: 2, 64>}]} {
    %c0_i32 = arith.constant 0 : i32
    %0 = arith.cmpi eq, %arg0, %c0_i32 : i32
    %1 = arith.extui %0 : i1 to i32
    %c0_i32_0 = arith.constant 0 : i32
    %2 = arith.cmpi ne, %1, %c0_i32_0 : i32
    scf.if %2 {
      %c0_48 = arith.constant 0 : index
      %c0_49 = arith.constant 0 : index
      %88 = vector.load %arg1[%c0_48, %c0_49] : memref<2x64xf32, #tpu.memory_space<vmem>>, vector<2x64xf32>
      %c0_50 = arith.constant 0 : index
      %c0_51 = arith.constant 0 : index
      %89 = vector.load %arg2[%c0_50, %c0_51] : memref<64x128xbf16, #tpu.memory_space<vmem>>, vector<64x128xbf16>
      %90 = arith.extf %89 : vector<64x128xbf16> to vector<64x128xf32>
      %cst_52 = arith.constant dense<0.000000e+00> : vector<2x128xf32>
      %91 = tpu.matmul %88, %90, %cst_52 {dimension_numbers = #tpu.dot_dimension_numbers<[1], [0], [0], [1], [0, 0, 1, 1], [], []>} : vector<2x64xf32>, vector<64x128xf32>, vector<2x128xf32> -> vector<2x128xf32>
      %c0_53 = arith.constant 0 : index
      %c0_54 = arith.constant 0 : index
      %92 = vector.load %arg3[%c0_53, %c0_54] : memref<1x128xf32, #tpu.memory_space<vmem>>, vector<1x128xf32>
      %93 = vector.broadcast %92 : vector<1x128xf32> to vector<2x128xf32>
      %94 = arith.addf %91, %93 : vector<2x128xf32>
      %cst_55 = arith.constant 0.000000e+00 : f32
      %95 = vector.broadcast %cst_55 : f32 to vector<2x128xf32>
      %96 = arith.maximumf %94, %95 : vector<2x128xf32>
      %c0_56 = arith.constant 0 : index
      %c0_57 = arith.constant 0 : index
      %97 = vector.load %arg4[%c0_56, %c0_57] : memref<128x128xbf16, #tpu.memory_space<vmem>>, vector<128x128xbf16>
      %98 = arith.extf %97 : vector<128x128xbf16> to vector<128x128xf32>
      %cst_58 = arith.constant dense<0.000000e+00> : vector<2x128xf32>
      %99 = tpu.matmul %96, %98, %cst_58 {dimension_numbers = #tpu.dot_dimension_numbers<[1], [0], [0], [1], [0, 0, 1, 1], [], []>} : vector<2x128xf32>, vector<128x128xf32>, vector<2x128xf32> -> vector<2x128xf32>
      %c0_59 = arith.constant 0 : index
      %c0_60 = arith.constant 0 : index
      %100 = vector.load %arg5[%c0_59, %c0_60] : memref<1x128xf32, #tpu.memory_space<vmem>>, vector<1x128xf32>
      %101 = vector.broadcast %100 : vector<1x128xf32> to vector<2x128xf32>
      %102 = arith.addf %99, %101 : vector<2x128xf32>
      %cst_61 = arith.constant 0.000000e+00 : f32
      %103 = vector.broadcast %cst_61 : f32 to vector<2x128xf32>
      %104 = arith.maximumf %102, %103 : vector<2x128xf32>
      %c0_62 = arith.constant 0 : index
      %c0_63 = arith.constant 0 : index
      %105 = vector.load %arg19[%c0_62, %c0_63] : memref<2x128xf32, #tpu.memory_space<vmem>>, vector<2x128xf32>
      tpu.vector_store %arg19[%c0_62, %c0_63], %104 {strides = array<i32>} : memref<2x128xf32, #tpu.memory_space<vmem>>, vector<2x128xf32>,
    } else {
    }
    %c0 = arith.constant 0 : index
    %c0_1 = arith.constant 0 : index
    %3 = vector.load %arg19[%c0, %c0_1] : memref<2x128xf32, #tpu.memory_space<vmem>>, vector<2x128xf32>
    %c0_2 = arith.constant 0 : index
    %c0_3 = arith.constant 0 : index
    %c0_4 = arith.constant 0 : index
    %4 = vector.load %arg6[%c0_2, %c0_3, %c0_4] : memref<1x128x128xbf16, #tpu.memory_space<vmem>>, vector<1x128x128xbf16>
    %5 = vector.shape_cast %4 : vector<1x128x128xbf16> to vector<128x128xbf16>
    %6 = arith.extf %5 : vector<128x128xbf16> to vector<128x128xf32>
    %cst = arith.constant dense<0.000000e+00> : vector<2x128xf32>
    %7 = tpu.matmul %3, %6, %cst {dimension_numbers = #tpu.dot_dimension_numbers<[1], [0], [0], [1], [0, 0, 1, 1], [], []>} : vector<2x128xf32>, vector<128x128xf32>, vector<2x128xf32> -> vector<2x128xf32>
    %c0_5 = arith.constant 0 : index
    %c0_6 = arith.constant 0 : index
    %c0_7 = arith.constant 0 : index
    %8 = vector.load %arg7[%c0_5, %c0_6, %c0_7] : memref<1x1x128xf32, #tpu.memory_space<vmem>>, vector<1x1x128xf32>
    %9 = vector.shape_cast %8 : vector<1x1x128xf32> to vector<1x128xf32>
    %10 = vector.broadcast %9 : vector<1x128xf32> to vector<2x128xf32>
    %11 = arith.addf %7, %10 : vector<2x128xf32>
    %12 = arith.addf %3, %11 : vector<2x128xf32>
    %c0_8 = arith.constant 0 : index
    %c0_9 = arith.constant 0 : index
    %c0_10 = arith.constant 0 : index
    %13 = vector.load %arg12[%c0_8, %c0_9, %c0_10] : memref<1x1x128xf32, #tpu.memory_space<vmem>>, vector<1x1x128xf32>
    %14 = vector.shape_cast %13 : vector<1x1x128xf32> to vector<1x128xf32>
    %c0_11 = arith.constant 0 : index
    %c0_12 = arith.constant 0 : index
    %c0_13 = arith.constant 0 : index
    %15 = vector.load %arg13[%c0_11, %c0_12, %c0_13] : memref<1x1x128xf32, #tpu.memory_space<vmem>>, vector<1x1x128xf32>
    %16 = vector.shape_cast %15 : vector<1x1x128xf32> to vector<1x128xf32>
    %cst_14 = arith.constant dense<0.000000e+00> : vector<2xf32>
    %17 = vector.multi_reduction <add>, %12, %cst_14 [1] : vector<2x128xf32> to vector<2xf32>
    %18 = vector.shape_cast %17 : vector<2xf32> to vector<2x1xf32>
    %cst_15 = arith.constant 1.280000e+02 : f32
    %19 = vector.broadcast %cst_15 : f32 to vector<2x1xf32>
    %20 = arith.divf %18, %19 : vector<2x1xf32>
    %21 = vector.broadcast %20 : vector<2x1xf32> to vector<2x128xf32>
    %22 = arith.subf %12, %21 : vector<2x128xf32>
    %23 = arith.mulf %22, %22 : vector<2x128xf32>
    %cst_16 = arith.constant dense<0.000000e+00> : vector<2xf32>
    %24 = vector.multi_reduction <add>, %23, %cst_16 [1] : vector<2x128xf32> to vector<2xf32>
    %25 = vector.shape_cast %24 : vector<2xf32> to vector<2x1xf32>
    %cst_17 = arith.constant 1.280000e+02 : f32
    %26 = vector.broadcast %cst_17 : f32 to vector<2x1xf32>
    %27 = arith.divf %25, %26 : vector<2x1xf32>
    %28 = vector.broadcast %20 : vector<2x1xf32> to vector<2x128xf32>
    %29 = arith.subf %12, %28 : vector<2x128xf32>
    %cst_18 = arith.constant 9.99999974E-6 : f32
    %30 = vector.broadcast %cst_18 : f32 to vector<2x1xf32>
    %31 = arith.addf %27, %30 : vector<2x1xf32>
    %32 = math.rsqrt %31 : vector<2x1xf32>
    %33 = vector.broadcast %32 : vector<2x1xf32> to vector<2x128xf32>
    %34 = arith.mulf %29, %33 : vector<2x128xf32>
    %35 = vector.broadcast %14 : vector<1x128xf32> to vector<2x128xf32>
    %36 = arith.mulf %34, %35 : vector<2x128xf32>
    %37 = vector.broadcast %16 : vector<1x128xf32> to vector<2x128xf32>
    %38 = arith.addf %36, %37 : vector<2x128xf32>
    %c0_19 = arith.constant 0 : index
    %c0_20 = arith.constant 0 : index
    %c0_21 = arith.constant 0 : index
    %39 = vector.load %arg8[%c0_19, %c0_20, %c0_21] : memref<1x128x256xbf16, #tpu.memory_space<vmem>>, vector<1x128x256xbf16>
    %40 = vector.shape_cast %39 : vector<1x128x256xbf16> to vector<128x256xbf16>
    %41 = arith.extf %40 : vector<128x256xbf16> to vector<128x256xf32>
    %cst_22 = arith.constant dense<0.000000e+00> : vector<2x256xf32>
    %42 = tpu.matmul %38, %41, %cst_22 {dimension_numbers = #tpu.dot_dimension_numbers<[1], [0], [0], [1], [0, 0, 1, 1], [], []>} : vector<2x128xf32>, vector<128x256xf32>, vector<2x256xf32> -> vector<2x256xf32>
    %c0_23 = arith.constant 0 : index
    %c0_24 = arith.constant 0 : index
    %c0_25 = arith.constant 0 : index
    %43 = vector.load %arg9[%c0_23, %c0_24, %c0_25] : memref<1x1x256xf32, #tpu.memory_space<vmem>>, vector<1x1x256xf32>
    %44 = vector.shape_cast %43 : vector<1x1x256xf32> to vector<1x256xf32>
    %45 = vector.broadcast %44 : vector<1x256xf32> to vector<2x256xf32>
    %46 = arith.addf %42, %45 : vector<2x256xf32>
    %cst_26 = arith.constant 0.000000e+00 : f32
    %47 = vector.broadcast %cst_26 : f32 to vector<2x256xf32>
    %48 = arith.maximumf %46, %47 : vector<2x256xf32>
    %c0_27 = arith.constant 0 : index
    %c0_28 = arith.constant 0 : index
    %c0_29 = arith.constant 0 : index
    %49 = vector.load %arg10[%c0_27, %c0_28, %c0_29] : memref<1x256x128xbf16, #tpu.memory_space<vmem>>, vector<1x256x128xbf16>
    %50 = vector.shape_cast %49 : vector<1x256x128xbf16> to vector<256x128xbf16>
    %51 = arith.extf %50 : vector<256x128xbf16> to vector<256x128xf32>
    %cst_30 = arith.constant dense<0.000000e+00> : vector<2x128xf32>
    %52 = tpu.matmul %48, %51, %cst_30 {dimension_numbers = #tpu.dot_dimension_numbers<[1], [0], [0], [1], [0, 0, 1, 1], [], []>} : vector<2x256xf32>, vector<256x128xf32>, vector<2x128xf32> -> vector<2x128xf32>
    %c0_31 = arith.constant 0 : index
    %c0_32 = arith.constant 0 : index
    %c0_33 = arith.constant 0 : index
    %53 = vector.load %arg11[%c0_31, %c0_32, %c0_33] : memref<1x1x128xf32, #tpu.memory_space<vmem>>, vector<1x1x128xf32>
    %54 = vector.shape_cast %53 : vector<1x1x128xf32> to vector<1x128xf32>
    %55 = vector.broadcast %54 : vector<1x128xf32> to vector<2x128xf32>
    %56 = arith.addf %52, %55 : vector<2x128xf32>
    %57 = arith.addf %38, %56 : vector<2x128xf32>
    %c0_34 = arith.constant 0 : index
    %c0_35 = arith.constant 0 : index
    %c0_36 = arith.constant 0 : index
    %58 = vector.load %arg14[%c0_34, %c0_35, %c0_36] : memref<1x1x128xf32, #tpu.memory_space<vmem>>, vector<1x1x128xf32>
    %59 = vector.shape_cast %58 : vector<1x1x128xf32> to vector<1x128xf32>
    %c0_37 = arith.constant 0 : index
    %c0_38 = arith.constant 0 : index
    %c0_39 = arith.constant 0 : index
    %60 = vector.load %arg15[%c0_37, %c0_38, %c0_39] : memref<1x1x128xf32, #tpu.memory_space<vmem>>, vector<1x1x128xf32>
    %61 = vector.shape_cast %60 : vector<1x1x128xf32> to vector<1x128xf32>
    %cst_40 = arith.constant dense<0.000000e+00> : vector<2xf32>
    %62 = vector.multi_reduction <add>, %57, %cst_40 [1] : vector<2x128xf32> to vector<2xf32>
    %63 = vector.shape_cast %62 : vector<2xf32> to vector<2x1xf32>
    %cst_41 = arith.constant 1.280000e+02 : f32
    %64 = vector.broadcast %cst_41 : f32 to vector<2x1xf32>
    %65 = arith.divf %63, %64 : vector<2x1xf32>
    %66 = vector.broadcast %65 : vector<2x1xf32> to vector<2x128xf32>
    %67 = arith.subf %57, %66 : vector<2x128xf32>
    %68 = arith.mulf %67, %67 : vector<2x128xf32>
    %cst_42 = arith.constant dense<0.000000e+00> : vector<2xf32>
    %69 = vector.multi_reduction <add>, %68, %cst_42 [1] : vector<2x128xf32> to vector<2xf32>
    %70 = vector.shape_cast %69 : vector<2xf32> to vector<2x1xf32>
    %cst_43 = arith.constant 1.280000e+02 : f32
    %71 = vector.broadcast %cst_43 : f32 to vector<2x1xf32>
    %72 = arith.divf %70, %71 : vector<2x1xf32>
    %73 = vector.broadcast %65 : vector<2x1xf32> to vector<2x128xf32>
    %74 = arith.subf %57, %73 : vector<2x128xf32>
    %cst_44 = arith.constant 9.99999974E-6 : f32
    %75 = vector.broadcast %cst_44 : f32 to vector<2x1xf32>
    %76 = arith.addf %72, %75 : vector<2x1xf32>
    %77 = math.rsqrt %76 : vector<2x1xf32>
    %78 = vector.broadcast %77 : vector<2x1xf32> to vector<2x128xf32>
    %79 = arith.mulf %74, %78 : vector<2x128xf32>
    %80 = vector.broadcast %59 : vector<1x128xf32> to vector<2x128xf32>
    %81 = arith.mulf %79, %80 : vector<2x128xf32>
    %82 = vector.broadcast %61 : vector<1x128xf32> to vector<2x128xf32>
    %83 = arith.addf %81, %82 : vector<2x128xf32>
    %c0_45 = arith.constant 0 : index
    %c0_46 = arith.constant 0 : index
    %84 = vector.load %arg19[%c0_45, %c0_46] : memref<2x128xf32, #tpu.memory_space<vmem>>, vector<2x128xf32>
    tpu.vector_store %arg19[%c0_45, %c0_46], %83 {strides = array<i32>} : memref<2x128xf32, #tpu.memory_space<vmem>>, vector<2x128xf32>,
    %c2_i32 = arith.constant 2 : i32
    %85 = arith.cmpi eq, %arg0, %c2_i32 : i32
    %86 = arith.extui %85 : i1 to i32
    %c0_i32_47 = arith.constant 0 : i32
    %87 = arith.cmpi ne, %86, %c0_i32_47 : i32
    scf.if %87 {
      %c0_48 = arith.constant 0 : index
      %c0_49 = arith.constant 0 : index
      %88 = vector.load %arg16[%c0_48, %c0_49] : memref<128x64xbf16, #tpu.memory_space<vmem>>, vector<128x64xbf16>
      %89 = arith.extf %88 : vector<128x64xbf16> to vector<128x64xf32>
      %cst_50 = arith.constant dense<0.000000e+00> : vector<2x64xf32>
      %90 = tpu.matmul %83, %89, %cst_50 {dimension_numbers = #tpu.dot_dimension_numbers<[1], [0], [0], [1], [0, 0, 1, 1], [], []>} : vector<2x128xf32>, vector<128x64xf32>, vector<2x64xf32> -> vector<2x64xf32>
      %c0_51 = arith.constant 0 : index
      %c0_52 = arith.constant 0 : index
      %91 = vector.load %arg17[%c0_51, %c0_52] : memref<1x64xf32, #tpu.memory_space<vmem>>, vector<1x64xf32>
      %92 = vector.broadcast %91 : vector<1x64xf32> to vector<2x64xf32>
      %93 = arith.addf %90, %92 : vector<2x64xf32>
      %cst_53 = arith.constant 0.000000e+00 : f32
      %94 = vector.broadcast %cst_53 : f32 to vector<2x64xf32>
      %95 = arith.maximumf %93, %94 : vector<2x64xf32>
      %c0_54 = arith.constant 0 : index
      %c0_55 = arith.constant 0 : index
      %96 = vector.load %arg18[%c0_54, %c0_55] : memref<2x64xf32, #tpu.memory_space<vmem>>, vector<2x64xf32>
      tpu.vector_store %arg18[%c0_54, %c0_55], %95 {strides = array<i32>} : memref<2x64xf32, #tpu.memory_space<vmem>>, vector<2x64xf32>,
    } else {
    }
    return
  }
  func.func @transform_0(%arg0: i32) -> (i32, i32) {
    %c0_i32 = arith.constant 0 : i32
    %c0_i32_0 = arith.constant 0 : i32
    %c0_i32_1 = arith.constant 0 : i32
    return %c0_i32, %c0_i32_0 : i32, i32
  }
  func.func @transform_1(%arg0: i32) -> (i32, i32) {
    %c0_i32 = arith.constant 0 : i32
    %c0_i32_0 = arith.constant 0 : i32
    %c0_i32_1 = arith.constant 0 : i32
    return %c0_i32, %c0_i32_0 : i32, i32
  }
  func.func @transform_2(%arg0: i32) -> (i32, i32) {
    %c0_i32 = arith.constant 0 : i32
    %c0_i32_0 = arith.constant 0 : i32
    %c0_i32_1 = arith.constant 0 : i32
    return %c0_i32, %c0_i32_0 : i32, i32
  }
  func.func @transform_3(%arg0: i32) -> (i32, i32) {
    %c0_i32 = arith.constant 0 : i32
    %c0_i32_0 = arith.constant 0 : i32
    %c0_i32_1 = arith.constant 0 : i32
    return %c0_i32, %c0_i32_0 : i32, i32
  }
  func.func @transform_4(%arg0: i32) -> (i32, i32) {
    %c0_i32 = arith.constant 0 : i32
    %c0_i32_0 = arith.constant 0 : i32
    %c0_i32_1 = arith.constant 0 : i32
    return %c0_i32, %c0_i32_0 : i32, i32
  }
  func.func @transform_5(%arg0: i32) -> (i32, i32, i32) {
    %c0_i32 = arith.constant 0 : i32
    %c0_i32_0 = arith.constant 0 : i32
    %c0_i32_1 = arith.constant 0 : i32
    return %arg0, %c0_i32, %c0_i32_0 : i32, i32, i32
  }
  func.func @transform_6(%arg0: i32) -> (i32, i32, i32) {
    %c0_i32 = arith.constant 0 : i32
    %c0_i32_0 = arith.constant 0 : i32
    %c0_i32_1 = arith.constant 0 : i32
    return %arg0, %c0_i32, %c0_i32_0 : i32, i32, i32
  }
  func.func @transform_7(%arg0: i32) -> (i32, i32, i32) {
    %c0_i32 = arith.constant 0 : i32
    %c0_i32_0 = arith.constant 0 : i32
    %c0_i32_1 = arith.constant 0 : i32
    return %arg0, %c0_i32, %c0_i32_0 : i32, i32, i32
  }
  func.func @transform_8(%arg0: i32) -> (i32, i32, i32) {
    %c0_i32 = arith.constant 0 : i32
    %c0_i32_0 = arith.constant 0 : i32
    %c0_i32_1 = arith.constant 0 : i32
    return %arg0, %c0_i32, %c0_i32_0 : i32, i32, i32
  }
  func.func @transform_9(%arg0: i32) -> (i32, i32, i32) {
    %c0_i32 = arith.constant 0 : i32
    %c0_i32_0 = arith.constant 0 : i32
    %c0_i32_1 = arith.constant 0 : i32
    return %arg0, %c0_i32, %c0_i32_0 : i32, i32, i32
  }
  func.func @transform_10(%arg0: i32) -> (i32, i32, i32) {
    %c0_i32 = arith.constant 0 : i32
    %c0_i32_0 = arith.constant 0 : i32
    %c0_i32_1 = arith.constant 0 : i32
    return %arg0, %c0_i32, %c0_i32_0 : i32, i32, i32
  }
  func.func @transform_11(%arg0: i32) -> (i32, i32, i32) {
    %c0_i32 = arith.constant 0 : i32
    %c0_i32_0 = arith.constant 0 : i32
    %c0_i32_1 = arith.constant 0 : i32
    return %arg0, %c0_i32, %c0_i32_0 : i32, i32, i32
  }
  func.func @transform_12(%arg0: i32) -> (i32, i32, i32) {
    %c0_i32 = arith.constant 0 : i32
    %c0_i32_0 = arith.constant 0 : i32
    %c0_i32_1 = arith.constant 0 : i32
    return %arg0, %c0_i32, %c0_i32_0 : i32, i32, i32
  }
  func.func @transform_13(%arg0: i32) -> (i32, i32, i32) {
    %c0_i32 = arith.constant 0 : i32
    %c0_i32_0 = arith.constant 0 : i32
    %c0_i32_1 = arith.constant 0 : i32
    return %arg0, %c0_i32, %c0_i32_0 : i32, i32, i32
  }
  func.func @transform_14(%arg0: i32) -> (i32, i32, i32) {
    %c0_i32 = arith.constant 0 : i32
    %c0_i32_0 = arith.constant 0 : i32
    %c0_i32_1 = arith.constant 0 : i32
    return %arg0, %c0_i32, %c0_i32_0 : i32, i32, i32
  }
  func.func @transform_15(%arg0: i32) -> (i32, i32) {
    %c0_i32 = arith.constant 0 : i32
    %c0_i32_0 = arith.constant 0 : i32
    %c0_i32_1 = arith.constant 0 : i32
    return %c0_i32, %c0_i32_0 : i32, i32
  }
  func.func @transform_16(%arg0: i32) -> (i32, i32) {
    %c0_i32 = arith.constant 0 : i32
    %c0_i32_0 = arith.constant 0 : i32
    %c0_i32_1 = arith.constant 0 : i32
    return %c0_i32, %c0_i32_0 : i32, i32
  }
  func.func @transform_17(%arg0: i32) -> (i32, i32) {
    %c0_i32 = arith.constant 0 : i32
    %c0_i32_0 = arith.constant 0 : i32
    %c0_i32_1 = arith.constant 0 : i32
    return %c0_i32, %c0_i32_0 : i32, i32
  }
}

</mosaic_0001>

<llo_original>
// kernel: tpu_custom_call.1
$region0: #{tpu_custom_call.1}
  #allocation0 [shape = 'u32[]', space=smem, size = 0x4, offset = 0x4, fixed_abs, tag = 'smem constant byte address 0x4 - core index']
  #allocation1 [shape = 'u32[144,128]{1,0:T(1,128)}', space=vmem, size = 0x12000, scoped, tag = 'internal scratch']
  #allocation2 [shape = 'f32[2,128]{1,0:T(2,128)}', space=vmem, size = 0x400, scoped, tag = 'scratch operand']
  %s0 = inlined_call_operand.hbm [shape: f32[2,64], index: 0, kind: input, shape index: {}]
  %s1 = inlined_call_operand.vmem [shape: bf16[64,128], index: 1, kind: input, shape index: {}]
  %s2 = inlined_call_operand.hbm [shape: f32[1,128], index: 2, kind: input, shape index: {}]
  %s3 = inlined_call_operand.vmem [shape: bf16[128,128], index: 3, kind: input, shape index: {}]
  %s4 = inlined_call_operand.hbm [shape: f32[1,128], index: 4, kind: input, shape index: {}]
  %s5 = inlined_call_operand.hbm [shape: bf16[3,128,128], index: 5, kind: input, shape index: {}]
  %s6 = inlined_call_operand.vmem [shape: f32[3,1,128], index: 6, kind: input, shape index: {}]
  %s7 = inlined_call_operand.hbm [shape: bf16[3,128,256], index: 7, kind: input, shape index: {}]
  %s8 = inlined_call_operand.vmem [shape: f32[3,1,256], index: 8, kind: input, shape index: {}]
  %s9 = inlined_call_operand.hbm [shape: bf16[3,256,128], index: 9, kind: input, shape index: {}]
  %s10 = inlined_call_operand.vmem [shape: f32[3,1,128], index: 10, kind: input, shape index: {}]
  %s11 = inlined_call_operand.vmem [shape: f32[3,1,128], index: 11, kind: input, shape index: {}]
  %s12 = inlined_call_operand.vmem [shape: f32[3,1,128], index: 12, kind: input, shape index: {}]
  %s13 = inlined_call_operand.vmem [shape: f32[3,1,128], index: 13, kind: input, shape index: {}]
  %s14 = inlined_call_operand.vmem [shape: f32[3,1,128], index: 14, kind: input, shape index: {}]
  %s15 = inlined_call_operand.vmem [shape: bf16[128,64], index: 15, kind: input, shape index: {}]
  %s16 = inlined_call_operand.vmem [shape: f32[1,64], index: 16, kind: input, shape index: {}]
  %s17 = inlined_call_operand.hbm [shape: f32[2,64], index: 17, kind: output, shape index: {}]
  %s18 = sld [smem:[#allocation0]]
  $region133: #{tpu_custom_call.1} parent=0
    _
  %s20 = ssub.s32 1, %s18
  %s21 = scalar_select 0, %s20, %s18
  $region1: #{tpu_custom_call.1} parent=0
    #allocation3 [shape = 'u8[1024]{0}', space=vmem, size = 0x400, scoped, tag = 'input window, operand 0, single buffered']
    #allocation4 [shape = 's32[2]{0}', space=sflag, size = 0x8, scoped, tag = 'scoped memory for tpu_custom_call.1']
    #allocation5 [shape = 's32[2]{0}', space=sflag, size = 0x8, scoped, tag = 'scoped memory for tpu_custom_call.1']
    #allocation6 [shape = 'u8[512]{0}', space=vmem, size = 0x400, scoped, tag = 'input window, operand 2, single buffered']
    #allocation7 [shape = 's32[1]{0}', space=sflag, size = 0x4, scoped, tag = 'scoped memory for tpu_custom_call.1']
    #allocation8 [shape = 'u8[512]{0}', space=vmem, size = 0x400, scoped, tag = 'input window, operand 4, single buffered']
    #allocation9 [shape = 'u8[65536]{0}', space=vmem, size = 0x10000, scoped, tag = 'input window, operand 5']
    #allocation10 [shape = 's32[2]{0}', space=sflag, size = 0x8, scoped, tag = 'scoped memory for tpu_custom_call.1']
    #allocation11 [shape = 'u8[131072]{0}', space=vmem, size = 0x20000, scoped, tag = 'input window, operand 7']
    #allocation12 [shape = 'u8[131072]{0}', space=vmem, size = 0x20000, scoped, tag = 'input window, operand 9']
    #allocation13 [shape = 's32[2]{0}', space=sflag, size = 0x8, scoped, tag = 'scoped memory for tpu_custom_call.1']
    #allocation14 [shape = 'u8[1024]{0}', space=vmem, size = 0x400, scoped, tag = 'output window, operand 0, single buffered']
    %22 = vsyncpa [#allocation4], 0
    %23 = vsyncpa [#allocation7], 0
    %24 = vsyncpa [#allocation10], 0
    %s25 = scalar_lea.sflag [#allocation10], 1
    %26 = vsyncpa %s25, 0
    %27 = vsyncpa [#allocation13], 0
    %s28 = scalar_lea.sflag [#allocation13], 1
    %29 = vsyncpa %s28, 0
    %30 = vsyncpa [#allocation5], 0
    loop: start=0, step=1, limit=5
    $region2: #{tpu_custom_call.1} parent=1 // loop_pre_header
      _
    $region3: #{tpu_custom_call.1} parent=1 // loop_header
      %s32 = sphi 0, %s36
      %p33 = scmp.ge.s32.totalorder %s32, 5
      %s40 = sphi 0, %s40
      %s42 = sphi 0, %s40
      %s43 = sphi 0, %s42
      %s57 = sphi 0, %s43
      %s61 = sphi 0, %s61
      %s63 = sphi 0, %s61
      %s64 = sphi 0, %s63
      %s78 = sphi 0, %s64
      %s82 = sphi 0, %s82
      %s84 = sphi 0, %s82
      %s85 = sphi 0, %s84
      %s99 = sphi 0, %s85
      %s103 = sphi 0, %s103
      %s105 = sphi 0, %s103
      %s106 = sphi 0, %s105
      %s120 = sphi 0, %s106
      %s124 = sphi 0, %s124
      %s126 = sphi 0, %s124
      %s127 = sphi 0, %s126
      %s141 = sphi 0, %s127
      %s147 = sphi 0, %s149
      %s150 = sphi 0, %s147
      %s151 = sphi 0, %s150
      %s167 = sphi 0, %s151
      %s173 = sphi 0, %s175
      %s176 = sphi 0, %s173
      %s177 = sphi 0, %s176
      %s193 = sphi 0, %s177
      %s199 = sphi 0, %s201
      %s202 = sphi 0, %s199
      %s203 = sphi 0, %s202
      %s219 = sphi 0, %s203
      %s225 = sphi 0, %s227
      %s228 = sphi 0, %s225
      %s229 = sphi 0, %s228
      %s245 = sphi 0, %s229
      %s251 = sphi 0, %s253
      %s254 = sphi 0, %s251
      %s255 = sphi 0, %s254
      %s271 = sphi 0, %s255
      %s277 = sphi 0, %s279
      %s280 = sphi 0, %s277
      %s281 = sphi 0, %s280
      %s297 = sphi 0, %s281
      %s303 = sphi 0, %s305
      %s306 = sphi 0, %s303
      %s307 = sphi 0, %s306
      %s323 = sphi 0, %s307
      %s329 = sphi 0, %s331
      %s332 = sphi 0, %s329
      %s333 = sphi 0, %s332
      %s349 = sphi 0, %s333
      %s355 = sphi 0, %s357
      %s358 = sphi 0, %s355
      %s359 = sphi 0, %s358
      %s375 = sphi 0, %s359
      %s381 = sphi 0, %s383
      %s384 = sphi 0, %s381
      %s385 = sphi 0, %s384
      %s401 = sphi 0, %s385
      %s405 = sphi 0, %s405
      %s407 = sphi 0, %s405
      %s408 = sphi 0, %s407
      %s422 = sphi 0, %s408
      %s426 = sphi 0, %s426
      %s428 = sphi 0, %s426
      %s429 = sphi 0, %s428
      %s443 = sphi 0, %s429
      %s447 = sphi 0, %s447
      %s449 = sphi 0, %s447
      %s450 = sphi 0, %s449
      %s464 = sphi 0, %s450
    $region4: #{tpu_custom_call.1} parent=1 // loop_header_branch
      %35 = sbr.rel (%p33) target = $region8
    $region5: #{tpu_custom_call.1} parent=1 // loop_body
      %s37 = ssub.s32 %s32, 1
      %s38 = ssub.s32 %s32, 2
      %s39 = sadd.s32 %s32, 1
      %s41 = sadd.s32 %s40, 1
      %p44 = scmp.eq.s32.totalorder %s32, 2
      %p45 = scmp.ne.s32.totalorder %s40, %s42
      %p46 = scmp.eq.s32.totalorder %s32, 0
      %p47 = por %p45, %p46
      %p48 = scmp.ne.s32.totalorder %s40, %s42
      %p49 = scmp.eq.s32.totalorder %s37, 2
      %p50 = por %p48, %p49
      %p51 = scmp.ne.s32.totalorder %s42, %s43
      %p52 = scmp.eq.s32.totalorder %s37, 0
      %p53 = por %p51, %p52
      %p54 = scmp.ne.s32.totalorder %s42, %s43
      %p55 = scmp.eq.s32.totalorder %s38, 2
      %p56 = por %p54, %p55
      %p58 = scmp.ne.s32.totalorder %s43, %s57
      %p59 = scmp.eq.s32.totalorder %s38, 0
      %p60 = por %p58, %p59
      %s62 = sadd.s32 %s61, 1
      %p65 = scmp.eq.s32.totalorder %s32, 2
      %p66 = scmp.ne.s32.totalorder %s61, %s63
      %p67 = scmp.eq.s32.totalorder %s32, 0
      %p68 = por %p66, %p67
      %p69 = scmp.ne.s32.totalorder %s61, %s63
      %p70 = scmp.eq.s32.totalorder %s37, 2
      %p71 = por %p69, %p70
      %p72 = scmp.ne.s32.totalorder %s63, %s64
      %p73 = scmp.eq.s32.totalorder %s37, 0
      %p74 = por %p72, %p73
      %p75 = scmp.ne.s32.totalorder %s63, %s64
      %p76 = scmp.eq.s32.totalorder %s38, 2
      %p77 = por %p75, %p76
      %p79 = scmp.ne.s32.totalorder %s64, %s78
      %p80 = scmp.eq.s32.totalorder %s38, 0
      %p81 = por %p79, %p80
      %s83 = sadd.s32 %s82, 1
      %p86 = scmp.eq.s32.totalorder %s32, 2
      %p87 = scmp.ne.s32.totalorder %s82, %s84
      %p88 = scmp.eq.s32.totalorder %s32, 0
      %p89 = por %p87, %p88
      %p90 = scmp.ne.s32.totalorder %s82, %s84
      %p91 = scmp.eq.s32.totalorder %s37, 2
      %p92 = por %p90, %p91
      %p93 = scmp.ne.s32.totalorder %s84, %s85
      %p94 = scmp.eq.s32.totalorder %s37, 0
      %p95 = por %p93, %p94
      %p96 = scmp.ne.s32.totalorder %s84, %s85
      %p97 = scmp.eq.s32.totalorder %s38, 2
      %p98 = por %p96, %p97
      %p100 = scmp.ne.s32.totalorder %s85, %s99
      %p101 = scmp.eq.s32.totalorder %s38, 0
      %p102 = por %p100, %p101
      %s104 = sadd.s32 %s103, 1
      %p107 = scmp.eq.s32.totalorder %s32, 2
      %p108 = scmp.ne.s32.totalorder %s103, %s105
      %p109 = scmp.eq.s32.totalorder %s32, 0
      %p110 = por %p108, %p109
      %p111 = scmp.ne.s32.totalorder %s103, %s105
      %p112 = scmp.eq.s32.totalorder %s37, 2
      %p113 = por %p111, %p112
      %p114 = scmp.ne.s32.totalorder %s105, %s106
      %p115 = scmp.eq.s32.totalorder %s37, 0
      %p116 = por %p114, %p115
      %p117 = scmp.ne.s32.totalorder %s105, %s106
      %p118 = scmp.eq.s32.totalorder %s38, 2
      %p119 = por %p117, %p118
      %p121 = scmp.ne.s32.totalorder %s106, %s120
      %p122 = scmp.eq.s32.totalorder %s38, 0
      %p123 = por %p121, %p122
      %s125 = sadd.s32 %s124, 1
      %p128 = scmp.eq.s32.totalorder %s32, 2
      %p129 = scmp.ne.s32.totalorder %s124, %s126
      %p130 = scmp.eq.s32.totalorder %s32, 0
      %p131 = por %p129, %p130
      %p132 = scmp.ne.s32.totalorder %s124, %s126
      %p133 = scmp.eq.s32.totalorder %s37, 2
      %p134 = por %p132, %p133
      %p135 = scmp.ne.s32.totalorder %s126, %s127
      %p136 = scmp.eq.s32.totalorder %s37, 0
      %p137 = por %p135, %p136
      %p138 = scmp.ne.s32.totalorder %s126, %s127
      %p139 = scmp.eq.s32.totalorder %s38, 2
      %p140 = por %p138, %p139
      %p142 = scmp.ne.s32.totalorder %s127, %s141
      %p143 = scmp.eq.s32.totalorder %s38, 0
      %p144 = por %p142, %p143
      %s145 = ssub.s32 %s32, %s39
      %p146 = scmp.eq.s32.totalorder %s145, 0
      %s148 = sadd.s32 %s147, 1
      %s149 = scalar_select %p146, %s147, %s148
      %p152 = pneg %p146
      %p153 = scmp.eq.s32.totalorder %s32, 2
      %p154 = por %p152, %p153
      %p155 = scmp.ne.s32.totalorder %s147, %s150
      %p156 = scmp.eq.s32.totalorder %s32, 0
      %p157 = por %p155, %p156
      %p158 = scmp.ne.s32.totalorder %s147, %s150
      %p159 = scmp.eq.s32.totalorder %s37, 2
      %p160 = por %p158, %p159
      %p161 = scmp.ne.s32.totalorder %s150, %s151
      %p162 = scmp.eq.s32.totalorder %s37, 0
      %p163 = por %p161, %p162
      %p164 = scmp.ne.s32.totalorder %s150, %s151
      %p165 = scmp.eq.s32.totalorder %s38, 2
      %p166 = por %p164, %p165
      %p168 = scmp.ne.s32.totalorder %s151, %s167
      %p169 = scmp.eq.s32.totalorder %s38, 0
      %p170 = por %p168, %p169
      %s171 = ssub.s32 %s32, %s39
      %p172 = scmp.eq.s32.totalorder %s171, 0
      %s174 = sadd.s32 %s173, 1
      %s175 = scalar_select %p172, %s173, %s174
      %p178 = pneg %p172
      %p179 = scmp.eq.s32.totalorder %s32, 2
      %p180 = por %p178, %p179
      %p181 = scmp.ne.s32.totalorder %s173, %s176
      %p182 = scmp.eq.s32.totalorder %s32, 0
      %p183 = por %p181, %p182
      %p184 = scmp.ne.s32.totalorder %s173, %s176
      %p185 = scmp.eq.s32.totalorder %s37, 2
      %p186 = por %p184, %p185
      %p187 = scmp.ne.s32.totalorder %s176, %s177
      %p188 = scmp.eq.s32.totalorder %s37, 0
      %p189 = por %p187, %p188
      %p190 = scmp.ne.s32.totalorder %s176, %s177
      %p191 = scmp.eq.s32.totalorder %s38, 2
      %p192 = por %p190, %p191
      %p194 = scmp.ne.s32.totalorder %s177, %s193
      %p195 = scmp.eq.s32.totalorder %s38, 0
      %p196 = por %p194, %p195
      %s197 = ssub.s32 %s32, %s39
      %p198 = scmp.eq.s32.totalorder %s197, 0
      %s200 = sadd.s32 %s199, 1
      %s201 = scalar_select %p198, %s199, %s200
      %p204 = pneg %p198
      %p205 = scmp.eq.s32.totalorder %s32, 2
      %p206 = por %p204, %p205
      %p207 = scmp.ne.s32.totalorder %s199, %s202
      %p208 = scmp.eq.s32.totalorder %s32, 0
      %p209 = por %p207, %p208
      %p210 = scmp.ne.s32.totalorder %s199, %s202
      %p211 = scmp.eq.s32.totalorder %s37, 2
      %p212 = por %p210, %p211
      %p213 = scmp.ne.s32.totalorder %s202, %s203
      %p214 = scmp.eq.s32.totalorder %s37, 0
      %p215 = por %p213, %p214
      %p216 = scmp.ne.s32.totalorder %s202, %s203
      %p217 = scmp.eq.s32.totalorder %s38, 2
      %p218 = por %p216, %p217
      %p220 = scmp.ne.s32.totalorder %s203, %s219
      %p221 = scmp.eq.s32.totalorder %s38, 0
      %p222 = por %p220, %p221
      %s223 = ssub.s32 %s32, %s39
      %p224 = scmp.eq.s32.totalorder %s223, 0
      %s226 = sadd.s32 %s225, 1
      %s227 = scalar_select %p224, %s225, %s226
      %p230 = pneg %p224
      %p231 = scmp.eq.s32.totalorder %s32, 2
      %p232 = por %p230, %p231
      %p233 = scmp.ne.s32.totalorder %s225, %s228
      %p234 = scmp.eq.s32.totalorder %s32, 0
      %p235 = por %p233, %p234
      %p236 = scmp.ne.s32.totalorder %s225, %s228
      %p237 = scmp.eq.s32.totalorder %s37, 2
      %p238 = por %p236, %p237
      %p239 = scmp.ne.s32.totalorder %s228, %s229
      %p240 = scmp.eq.s32.totalorder %s37, 0
      %p241 = por %p239, %p240
      %p242 = scmp.ne.s32.totalorder %s228, %s229
      %p243 = scmp.eq.s32.totalorder %s38, 2
      %p244 = por %p242, %p243
      %p246 = scmp.ne.s32.totalorder %s229, %s245
      %p247 = scmp.eq.s32.totalorder %s38, 0
      %p248 = por %p246, %p247
      %s249 = ssub.s32 %s32, %s39
      %p250 = scmp.eq.s32.totalorder %s249, 0
      %s252 = sadd.s32 %s251, 1
      %s253 = scalar_select %p250, %s251, %s252
      %p256 = pneg %p250
      %p257 = scmp.eq.s32.totalorder %s32, 2
      %p258 = por %p256, %p257
      %p259 = scmp.ne.s32.totalorder %s251, %s254
      %p260 = scmp.eq.s32.totalorder %s32, 0
      %p261 = por %p259, %p260
      %p262 = scmp.ne.s32.totalorder %s251, %s254
      %p263 = scmp.eq.s32.totalorder %s37, 2
      %p264 = por %p262, %p263
      %p265 = scmp.ne.s32.totalorder %s254, %s255
      %p266 = scmp.eq.s32.totalorder %s37, 0
      %p267 = por %p265, %p266
      %p268 = scmp.ne.s32.totalorder %s254, %s255
      %p269 = scmp.eq.s32.totalorder %s38, 2
      %p270 = por %p268, %p269
      %p272 = scmp.ne.s32.totalorder %s255, %s271
      %p273 = scmp.eq.s32.totalorder %s38, 0
      %p274 = por %p272, %p273
      %s275 = ssub.s32 %s32, %s39
      %p276 = scmp.eq.s32.totalorder %s275, 0
      %s278 = sadd.s32 %s277, 1
      %s279 = scalar_select %p276, %s277, %s278
      %p282 = pneg %p276
      %p283 = scmp.eq.s32.totalorder %s32, 2
      %p284 = por %p282, %p283
      %p285 = scmp.ne.s32.totalorder %s277, %s280
      %p286 = scmp.eq.s32.totalorder %s32, 0
      %p287 = por %p285, %p286
      %p288 = scmp.ne.s32.totalorder %s277, %s280
      %p289 = scmp.eq.s32.totalorder %s37, 2
      %p290 = por %p288, %p289
      %p291 = scmp.ne.s32.totalorder %s280, %s281
      %p292 = scmp.eq.s32.totalorder %s37, 0
      %p293 = por %p291, %p292
      %p294 = scmp.ne.s32.totalorder %s280, %s281
      %p295 = scmp.eq.s32.totalorder %s38, 2
      %p296 = por %p294, %p295
      %p298 = scmp.ne.s32.totalorder %s281, %s297
      %p299 = scmp.eq.s32.totalorder %s38, 0
      %p300 = por %p298, %p299
      %s301 = ssub.s32 %s32, %s39
      %p302 = scmp.eq.s32.totalorder %s301, 0
      %s304 = sadd.s32 %s303, 1
      %s305 = scalar_select %p302, %s303, %s304
      %p308 = pneg %p302
      %p309 = scmp.eq.s32.totalorder %s32, 2
      %p310 = por %p308, %p309
      %p311 = scmp.ne.s32.totalorder %s303, %s306
      %p312 = scmp.eq.s32.totalorder %s32, 0
      %p313 = por %p311, %p312
      %p314 = scmp.ne.s32.totalorder %s303, %s306
      %p315 = scmp.eq.s32.totalorder %s37, 2
      %p316 = por %p314, %p315
      %p317 = scmp.ne.s32.totalorder %s306, %s307
      %p318 = scmp.eq.s32.totalorder %s37, 0
      %p319 = por %p317, %p318
      %p320 = scmp.ne.s32.totalorder %s306, %s307
      %p321 = scmp.eq.s32.totalorder %s38, 2
      %p322 = por %p320, %p321
      %p324 = scmp.ne.s32.totalorder %s307, %s323
      %p325 = scmp.eq.s32.totalorder %s38, 0
      %p326 = por %p324, %p325
      %s327 = ssub.s32 %s32, %s39
      %p328 = scmp.eq.s32.totalorder %s327, 0
      %s330 = sadd.s32 %s329, 1
      %s331 = scalar_select %p328, %s329, %s330
      %p334 = pneg %p328
      %p335 = scmp.eq.s32.totalorder %s32, 2
      %p336 = por %p334, %p335
      %p337 = scmp.ne.s32.totalorder %s329, %s332
      %p338 = scmp.eq.s32.totalorder %s32, 0
      %p339 = por %p337, %p338
      %p340 = scmp.ne.s32.totalorder %s329, %s332
      %p341 = scmp.eq.s32.totalorder %s37, 2
      %p342 = por %p340, %p341
      %p343 = scmp.ne.s32.totalorder %s332, %s333
      %p344 = scmp.eq.s32.totalorder %s37, 0
      %p345 = por %p343, %p344
      %p346 = scmp.ne.s32.totalorder %s332, %s333
      %p347 = scmp.eq.s32.totalorder %s38, 2
      %p348 = por %p346, %p347
      %p350 = scmp.ne.s32.totalorder %s333, %s349
      %p351 = scmp.eq.s32.totalorder %s38, 0
      %p352 = por %p350, %p351
      %s353 = ssub.s32 %s32, %s39
      %p354 = scmp.eq.s32.totalorder %s353, 0
      %s356 = sadd.s32 %s355, 1
      %s357 = scalar_select %p354, %s355, %s356
      %p360 = pneg %p354
      %p361 = scmp.eq.s32.totalorder %s32, 2
      %p362 = por %p360, %p361
      %p363 = scmp.ne.s32.totalorder %s355, %s358
      %p364 = scmp.eq.s32.totalorder %s32, 0
      %p365 = por %p363, %p364
      %p366 = scmp.ne.s32.totalorder %s355, %s358
      %p367 = scmp.eq.s32.totalorder %s37, 2
      %p368 = por %p366, %p367
      %p369 = scmp.ne.s32.totalorder %s358, %s359
      %p370 = scmp.eq.s32.totalorder %s37, 0
      %p371 = por %p369, %p370
      %p372 = scmp.ne.s32.totalorder %s358, %s359
      %p373 = scmp.eq.s32.totalorder %s38, 2
      %p374 = por %p372, %p373
      %p376 = scmp.ne.s32.totalorder %s359, %s375
      %p377 = scmp.eq.s32.totalorder %s38, 0
      %p378 = por %p376, %p377
      %s379 = ssub.s32 %s32, %s39
      %p380 = scmp.eq.s32.totalorder %s379, 0
      %s382 = sadd.s32 %s381, 1
      %s383 = scalar_select %p380, %s381, %s382
      %p386 = pneg %p380
      %p387 = scmp.eq.s32.totalorder %s32, 2
      %p388 = por %p386, %p387
      %p389 = scmp.ne.s32.totalorder %s381, %s384
      %p390 = scmp.eq.s32.totalorder %s32, 0
      %p391 = por %p389, %p390
      %p392 = scmp.ne.s32.totalorder %s381, %s384
      %p393 = scmp.eq.s32.totalorder %s37, 2
      %p394 = por %p392, %p393
      %p395 = scmp.ne.s32.totalorder %s384, %s385
      %p396 = scmp.eq.s32.totalorder %s37, 0
      %p397 = por %p395, %p396
      %p398 = scmp.ne.s32.totalorder %s384, %s385
      %p399 = scmp.eq.s32.totalorder %s38, 2
      %p400 = por %p398, %p399
      %p402 = scmp.ne.s32.totalorder %s385, %s401
      %p403 = scmp.eq.s32.totalorder %s38, 0
      %p404 = por %p402, %p403
      %s406 = sadd.s32 %s405, 1
      %p409 = scmp.eq.s32.totalorder %s32, 2
      %p410 = scmp.ne.s32.totalorder %s405, %s407
      %p411 = scmp.eq.s32.totalorder %s32, 0
      %p412 = por %p410, %p411
      %p413 = scmp.ne.s32.totalorder %s405, %s407
      %p414 = scmp.eq.s32.totalorder %s37, 2
      %p415 = por %p413, %p414
      %p416 = scmp.ne.s32.totalorder %s407, %s408
      %p417 = scmp.eq.s32.totalorder %s37, 0
      %p418 = por %p416, %p417
      %p419 = scmp.ne.s32.totalorder %s407, %s408
      %p420 = scmp.eq.s32.totalorder %s38, 2
      %p421 = por %p419, %p420
      %p423 = scmp.ne.s32.totalorder %s408, %s422
      %p424 = scmp.eq.s32.totalorder %s38, 0
      %p425 = por %p423, %p424
      %s427 = sadd.s32 %s426, 1
      %p430 = scmp.eq.s32.totalorder %s32, 2
      %p431 = scmp.ne.s32.totalorder %s426, %s428
      %p432 = scmp.eq.s32.totalorder %s32, 0
      %p433 = por %p431, %p432
      %p434 = scmp.ne.s32.totalorder %s426, %s428
      %p435 = scmp.eq.s32.totalorder %s37, 2
      %p436 = por %p434, %p435
      %p437 = scmp.ne.s32.totalorder %s428, %s429
      %p438 = scmp.eq.s32.totalorder %s37, 0
      %p439 = por %p437, %p438
      %p440 = scmp.ne.s32.totalorder %s428, %s429
      %p441 = scmp.eq.s32.totalorder %s38, 2
      %p442 = por %p440, %p441
      %p444 = scmp.ne.s32.totalorder %s429, %s443
      %p445 = scmp.eq.s32.totalorder %s38, 0
      %p446 = por %p444, %p445
      %s448 = sadd.s32 %s447, 1
      %p451 = scmp.eq.s32.totalorder %s32, 2
      %p452 = scmp.ne.s32.totalorder %s447, %s449
      %p453 = scmp.eq.s32.totalorder %s32, 0
      %p454 = por %p452, %p453
      %p455 = scmp.ne.s32.totalorder %s447, %s449
      %p456 = scmp.eq.s32.totalorder %s37, 2
      %p457 = por %p455, %p456
      %p458 = scmp.ne.s32.totalorder %s449, %s450
      %p459 = scmp.eq.s32.totalorder %s37, 0
      %p460 = por %p458, %p459
      %p461 = scmp.ne.s32.totalorder %s449, %s450
      %p462 = scmp.eq.s32.totalorder %s38, 2
      %p463 = por %p461, %p462
      %p465 = scmp.ne.s32.totalorder %s450, %s464
      %p466 = scmp.eq.s32.totalorder %s38, 0
      %p467 = por %p465, %p466
      %p468 = scmp.le.s32.totalorder 1, %s32
      %p469 = scmp.lt.s32.totalorder %s32, 4
      %p470 = pnand %p468, %p469
      %p471 = pneg %p470
      // Predicated region
      $region9: #{tpu_custom_call.1} parent=5 // pred_check
        _
      $region10: #{tpu_custom_call.1} parent=5 // pred_check_branch
        %473 = sbr.rel (%p470) target = $region12
      $region11: #{tpu_custom_call.1} parent=5 // pred_region
        %s474 = ssub.s32 %s32, 1
        // Predicated region
        $region13: #{tpu_custom_call.1} parent=11 // pred_check
          %p475 = pneg %p53
        $region14: #{tpu_custom_call.1} parent=11 // pred_check_branch
          %477 = sbr.rel (%p475) target = $region16
        $region15: #{tpu_custom_call.1} parent=11 // pred_region
          %s479 = ssub.s32 32, 32
          %480 = vsyncadd [#allocation4], %s479
          %s482 = sshll.u32 [#allocation3], 4
          %s483 = int_to_ptr.vmem [resolvable:$true] %s482
          %485 = dma.hbm_to_vmem [thread:$0]  %s0, 32, %s483, [#allocation4]
        $region16: #{tpu_custom_call.1} parent=11 // pred_fallthru
          _
        // Predicated region
        $region17: #{tpu_custom_call.1} parent=11 // pred_check
          %p486 = pneg %p74
        $region18: #{tpu_custom_call.1} parent=11 // pred_check_branch
          %488 = sbr.rel (%p486) target = $region20
        $region19: #{tpu_custom_call.1} parent=11 // pred_region
          _
        $region20: #{tpu_custom_call.1} parent=11 // pred_fallthru
          _
        // Predicated region
        $region21: #{tpu_custom_call.1} parent=11 // pred_check
          %p489 = pneg %p95
        $region22: #{tpu_custom_call.1} parent=11 // pred_check_branch
          %491 = sbr.rel (%p489) target = $region24
        $region23: #{tpu_custom_call.1} parent=11 // pred_region
          %s493 = ssub.s32 16, 16
          %494 = vsyncadd [#allocation7], %s493
          %s496 = sshll.u32 [#allocation6], 4
          %s497 = int_to_ptr.vmem [resolvable:$true] %s496
          %499 = dma.hbm_to_vmem [thread:$0]  %s2, 16, %s497, [#allocation7]
        $region24: #{tpu_custom_call.1} parent=11 // pred_fallthru
          _
        // Predicated region
        $region25: #{tpu_custom_call.1} parent=11 // pred_check
          %p500 = pneg %p116
        $region26: #{tpu_custom_call.1} parent=11 // pred_check_branch
          %502 = sbr.rel (%p500) target = $region28
        $region27: #{tpu_custom_call.1} parent=11 // pred_region
          _
        $region28: #{tpu_custom_call.1} parent=11 // pred_fallthru
          _
        // Predicated region
        $region29: #{tpu_custom_call.1} parent=11 // pred_check
          %p503 = pneg %p137
        $region30: #{tpu_custom_call.1} parent=11 // pred_check_branch
          %505 = sbr.rel (%p503) target = $region32
        $region31: #{tpu_custom_call.1} parent=11 // pred_region
          %s507 = ssub.s32 16, 16
          %508 = vsyncadd [#allocation7], %s507
          %s510 = sshll.u32 [#allocation8], 4
          %s511 = int_to_ptr.vmem [resolvable:$true] %s510
          %513 = dma.hbm_to_vmem [thread:$0]  %s4, 16, %s511, [#allocation7]
        $region32: #{tpu_custom_call.1} parent=11 // pred_fallthru
          _
        // Predicated region
        $region33: #{tpu_custom_call.1} parent=11 // pred_check
          %p514 = pneg %p418
        $region34: #{tpu_custom_call.1} parent=11 // pred_check_branch
          %516 = sbr.rel (%p514) target = $region36
        $region35: #{tpu_custom_call.1} parent=11 // pred_region
          _
        $region36: #{tpu_custom_call.1} parent=11 // pred_fallthru
          _
        // Predicated region
        $region37: #{tpu_custom_call.1} parent=11 // pred_check
          %p517 = pneg %p439
        $region38: #{tpu_custom_call.1} parent=11 // pred_check_branch
          %519 = sbr.rel (%p517) target = $region40
        $region39: #{tpu_custom_call.1} parent=11 // pred_region
          _
        $region40: #{tpu_custom_call.1} parent=11 // pred_fallthru
          _
      $region12: #{tpu_custom_call.1} parent=5 // pred_fallthru
        _
      %p520 = scmp.lt.s32.totalorder %s32, 3
      // Predicated region
      $region41: #{tpu_custom_call.1} parent=5 // pred_check
        %p521 = pneg %p520
      $region42: #{tpu_custom_call.1} parent=5 // pred_check_branch
        %523 = sbr.rel (%p521) target = $region44
      $region43: #{tpu_custom_call.1} parent=5 // pred_region
        // Predicated region
        $region45: #{tpu_custom_call.1} parent=43 // pred_check
          %p524 = pneg %p157
        $region46: #{tpu_custom_call.1} parent=43 // pred_check_branch
          %526 = sbr.rel (%p524) target = $region48
        $region47: #{tpu_custom_call.1} parent=43 // pred_region
          %s527 = sand.u32 %s32, 1
          %s528 = scalar_lea.sflag [#allocation10], %s527
          %s529 = sand.u32 %s147, 1
          %s530 = smul.addr %s529, 64
          %s531 = scalar_lea.vmem [#allocation9], %s530
          %s533 = ssub.s32 1024, 1024
          %534 = vsyncadd %s528, %s533
          %s535 = smul.addr %s32, 16
          %s536 = smul.addr %s535, 64
          %s537 = scalar_lea.hbm %s5, %s536
          %s538 = sshll.u32 %s531, 4
          %s539 = int_to_ptr.vmem [resolvable:$true] %s538
          %544 = dma.hbm_to_vmem [thread:$0]  %s537, 1024, %s539, %s528, 64, 64, 4
        $region48: #{tpu_custom_call.1} parent=43 // pred_fallthru
          _
        // Predicated region
        $region49: #{tpu_custom_call.1} parent=43 // pred_check
          %p545 = pneg %p183
        $region50: #{tpu_custom_call.1} parent=43 // pred_check_branch
          %547 = sbr.rel (%p545) target = $region52
        $region51: #{tpu_custom_call.1} parent=43 // pred_region
          %p548 = scmp.lt.s32.totalorder %s32, 2
          %s549 = scalar_select %p548, %s32, 2
          %s550 = scalar_lea.vmem %s6, %s549
        $region52: #{tpu_custom_call.1} parent=43 // pred_fallthru
          _
        // Predicated region
        $region53: #{tpu_custom_call.1} parent=43 // pred_check
          %p551 = pneg %p209
        $region54: #{tpu_custom_call.1} parent=43 // pred_check_branch
          %553 = sbr.rel (%p551) target = $region56
        $region55: #{tpu_custom_call.1} parent=43 // pred_region
          %s554 = sand.u32 %s32, 1
          %s555 = scalar_lea.sflag [#allocation10], %s554
          %s556 = sand.u32 %s199, 1
          %s557 = smul.addr %s556, 128
          %s558 = scalar_lea.vmem [#allocation11], %s557
          %s560 = ssub.s32 2048, 2048
          %561 = vsyncadd %s555, %s560
          %s562 = smul.addr %s32, 32
          %s563 = smul.addr %s562, 64
          %s564 = scalar_lea.hbm %s7, %s563
          %s565 = sshll.u32 %s558, 4
          %s566 = int_to_ptr.vmem [resolvable:$true] %s565
          %571 = dma.hbm_to_vmem [thread:$0]  %s564, 2048, %s566, %s555, 128, 128, 8
        $region56: #{tpu_custom_call.1} parent=43 // pred_fallthru
          _
        // Predicated region
        $region57: #{tpu_custom_call.1} parent=43 // pred_check
          %p572 = pneg %p235
        $region58: #{tpu_custom_call.1} parent=43 // pred_check_branch
          %574 = sbr.rel (%p572) target = $region60
        $region59: #{tpu_custom_call.1} parent=43 // pred_region
          %p575 = scmp.lt.s32.totalorder %s32, 2
          %s576 = scalar_select %p575, %s32, 2
          %s577 = smul.addr %s576, 2
          %s578 = scalar_lea.vmem %s8, %s577
        $region60: #{tpu_custom_call.1} parent=43 // pred_fallthru
          _
        // Predicated region
        $region61: #{tpu_custom_call.1} parent=43 // pred_check
          %p579 = pneg %p261
        $region62: #{tpu_custom_call.1} parent=43 // pred_check_branch
          %581 = sbr.rel (%p579) target = $region64
        $region63: #{tpu_custom_call.1} parent=43 // pred_region
          %s582 = sand.u32 %s251, 1
          %s583 = scalar_lea.sflag [#allocation13], %s582
          %s584 = sand.u32 %s251, 1
          %s585 = smul.addr %s584, 128
          %s586 = scalar_lea.vmem [#allocation12], %s585
          %s588 = ssub.s32 2048, 2048
          %589 = vsyncadd %s583, %s588
          %s590 = smul.addr %s32, 32
          %s591 = smul.addr %s590, 64
          %s592 = scalar_lea.hbm %s9, %s591
          %s593 = sshll.u32 %s586, 4
          %s594 = int_to_ptr.vmem [resolvable:$true] %s593
          %599 = dma.hbm_to_vmem [thread:$0]  %s592, 2048, %s594, %s583, 64, 64, 4
        $region64: #{tpu_custom_call.1} parent=43 // pred_fallthru
          _
        // Predicated region
        $region65: #{tpu_custom_call.1} parent=43 // pred_check
          %p600 = pneg %p287
        $region66: #{tpu_custom_call.1} parent=43 // pred_check_branch
          %602 = sbr.rel (%p600) target = $region68
        $region67: #{tpu_custom_call.1} parent=43 // pred_region
          %p603 = scmp.lt.s32.totalorder %s32, 2
          %s604 = scalar_select %p603, %s32, 2
          %s605 = scalar_lea.vmem %s10, %s604
        $region68: #{tpu_custom_call.1} parent=43 // pred_fallthru
          _
        // Predicated region
        $region69: #{tpu_custom_call.1} parent=43 // pred_check
          %p606 = pneg %p313
        $region70: #{tpu_custom_call.1} parent=43 // pred_check_branch
          %608 = sbr.rel (%p606) target = $region72
        $region71: #{tpu_custom_call.1} parent=43 // pred_region
          %p609 = scmp.lt.s32.totalorder %s32, 2
          %s610 = scalar_select %p609, %s32, 2
          %s611 = scalar_lea.vmem %s11, %s610
        $region72: #{tpu_custom_call.1} parent=43 // pred_fallthru
          _
        // Predicated region
        $region73: #{tpu_custom_call.1} parent=43 // pred_check
          %p612 = pneg %p339
        $region74: #{tpu_custom_call.1} parent=43 // pred_check_branch
          %614 = sbr.rel (%p612) target = $region76
        $region75: #{tpu_custom_call.1} parent=43 // pred_region
          %p615 = scmp.lt.s32.totalorder %s32, 2
          %s616 = scalar_select %p615, %s32, 2
          %s617 = scalar_lea.vmem %s12, %s616
        $region76: #{tpu_custom_call.1} parent=43 // pred_fallthru
          _
        // Predicated region
        $region77: #{tpu_custom_call.1} parent=43 // pred_check
          %p618 = pneg %p365
        $region78: #{tpu_custom_call.1} parent=43 // pred_check_branch
          %620 = sbr.rel (%p618) target = $region80
        $region79: #{tpu_custom_call.1} parent=43 // pred_region
          %p621 = scmp.lt.s32.totalorder %s32, 2
          %s622 = scalar_select %p621, %s32, 2
          %s623 = scalar_lea.vmem %s13, %s622
        $region80: #{tpu_custom_call.1} parent=43 // pred_fallthru
          _
        // Predicated region
        $region81: #{tpu_custom_call.1} parent=43 // pred_check
          %p624 = pneg %p391
        $region82: #{tpu_custom_call.1} parent=43 // pred_check_branch
          %626 = sbr.rel (%p624) target = $region84
        $region83: #{tpu_custom_call.1} parent=43 // pred_region
          %p627 = scmp.lt.s32.totalorder %s32, 2
          %s628 = scalar_select %p627, %s32, 2
          %s629 = scalar_lea.vmem %s14, %s628
        $region84: #{tpu_custom_call.1} parent=43 // pred_fallthru
          _
      $region44: #{tpu_custom_call.1} parent=5 // pred_fallthru
        _
      %p630 = scmp.le.s32.totalorder 1, %s32
      %p631 = scmp.lt.s32.totalorder %s32, 4
      %p632 = pnand %p630, %p631
      %p633 = pneg %p632
      // Predicated region
      $region85: #{tpu_custom_call.1} parent=5 // pred_check
        _
      $region86: #{tpu_custom_call.1} parent=5 // pred_check_branch
        %635 = sbr.rel (%p632) target = $region88
      $region87: #{tpu_custom_call.1} parent=5 // pred_region
        %s636 = ssub.s32 %s32, 1
        // Predicated region
        $region89: #{tpu_custom_call.1} parent=87 // pred_check
          %p637 = pneg %p53
        $region90: #{tpu_custom_call.1} parent=87 // pred_check_branch
          %639 = sbr.rel (%p637) target = $region92
        $region91: #{tpu_custom_call.1} parent=87 // pred_region
          %640 = dma.done [#allocation4], 32
        $region92: #{tpu_custom_call.1} parent=87 // pred_fallthru
          _
        // Predicated region
        $region93: #{tpu_custom_call.1} parent=87 // pred_check
          %p641 = pneg %p95
        $region94: #{tpu_custom_call.1} parent=87 // pred_check_branch
          %643 = sbr.rel (%p641) target = $region96
        $region95: #{tpu_custom_call.1} parent=87 // pred_region
          %644 = dma.done [#allocation7], 16
        $region96: #{tpu_custom_call.1} parent=87 // pred_fallthru
          _
        // Predicated region
        $region97: #{tpu_custom_call.1} parent=87 // pred_check
          %p645 = pneg %p137
        $region98: #{tpu_custom_call.1} parent=87 // pred_check_branch
          %647 = sbr.rel (%p645) target = $region100
        $region99: #{tpu_custom_call.1} parent=87 // pred_region
          %648 = dma.done [#allocation7], 16
        $region100: #{tpu_custom_call.1} parent=87 // pred_fallthru
          _
        %s649 = sand.u32 %s37, 1
        %s650 = scalar_lea.sflag [#allocation10], %s649
        %s651 = sand.u32 %s150, 1
        %s652 = smul.addr %s651, 64
        %s653 = scalar_lea.vmem [#allocation9], %s652
        // Predicated region
        $region101: #{tpu_custom_call.1} parent=87 // pred_check
          %p654 = pneg %p163
        $region102: #{tpu_custom_call.1} parent=87 // pred_check_branch
          %656 = sbr.rel (%p654) target = $region104
        $region103: #{tpu_custom_call.1} parent=87 // pred_region
          %657 = dma.done %s650, 1024
        $region104: #{tpu_custom_call.1} parent=87 // pred_fallthru
          _
        %s658 = sand.u32 %s37, 1
        %s659 = scalar_lea.sflag [#allocation10], %s658
        %s660 = sand.u32 %s202, 1
        %s661 = smul.addr %s660, 128
        %s662 = scalar_lea.vmem [#allocation11], %s661
        // Predicated region
        $region105: #{tpu_custom_call.1} parent=87 // pred_check
          %p663 = pneg %p215
        $region106: #{tpu_custom_call.1} parent=87 // pred_check_branch
          %665 = sbr.rel (%p663) target = $region108
        $region107: #{tpu_custom_call.1} parent=87 // pred_region
          %666 = dma.done %s659, 2048
        $region108: #{tpu_custom_call.1} parent=87 // pred_fallthru
          _
        %s667 = sand.u32 %s254, 1
        %s668 = scalar_lea.sflag [#allocation13], %s667
        %s669 = sand.u32 %s254, 1
        %s670 = smul.addr %s669, 128
        %s671 = scalar_lea.vmem [#allocation12], %s670
        // Predicated region
        $region109: #{tpu_custom_call.1} parent=87 // pred_check
          %p672 = pneg %p267
        $region110: #{tpu_custom_call.1} parent=87 // pred_check_branch
          %674 = sbr.rel (%p672) target = $region112
        $region111: #{tpu_custom_call.1} parent=87 // pred_region
          %675 = dma.done %s668, 2048
        $region112: #{tpu_custom_call.1} parent=87 // pred_fallthru
          _
        %p676 = pneg %p53
        %p677 = pneg %p50
        %p678 = pneg %p74
        %p679 = pneg %p71
        %p680 = pneg %p95
        %p681 = pneg %p92
        %p682 = pneg %p116
        %p683 = pneg %p113
        %p684 = pneg %p137
        %p685 = pneg %p134
        %s686 = sand.u32 %s37, 1
        %s687 = scalar_lea.sflag [#allocation10], %s686
        %s688 = sand.u32 %s150, 1
        %s689 = smul.addr %s688, 64
        %s690 = scalar_lea.vmem [#allocation9], %s689
        %p691 = pneg %p163
        %p692 = pneg %p160
        %p693 = scmp.lt.s32.totalorder %s37, 2
        %s694 = scalar_select %p693, %s37, 2
        %s695 = scalar_lea.vmem %s6, %s694
        %p696 = pneg %p189
        %p697 = pneg %p186
        %s698 = sand.u32 %s37, 1
        %s699 = scalar_lea.sflag [#allocation10], %s698
        %s700 = sand.u32 %s202, 1
        %s701 = smul.addr %s700, 128
        %s702 = scalar_lea.vmem [#allocation11], %s701
        %p703 = pneg %p215
        %p704 = pneg %p212
        %p705 = scmp.lt.s32.totalorder %s37, 2
        %s706 = scalar_select %p705, %s37, 2
        %s707 = smul.addr %s706, 2
        %s708 = scalar_lea.vmem %s8, %s707
        %p709 = pneg %p241
        %p710 = pneg %p238
        %s711 = sand.u32 %s254, 1
        %s712 = scalar_lea.sflag [#allocation13], %s711
        %s713 = sand.u32 %s254, 1
        %s714 = smul.addr %s713, 128
        %s715 = scalar_lea.vmem [#allocation12], %s714
        %p716 = pneg %p267
        %p717 = pneg %p264
        %p718 = scmp.lt.s32.totalorder %s37, 2
        %s719 = scalar_select %p718, %s37, 2
        %s720 = scalar_lea.vmem %s10, %s719
        %p721 = pneg %p293
        %p722 = pneg %p290
        %p723 = scmp.lt.s32.totalorder %s37, 2
        %s724 = scalar_select %p723, %s37, 2
        %s725 = scalar_lea.vmem %s11, %s724
        %p726 = pneg %p319
        %p727 = pneg %p316
        %p728 = scmp.lt.s32.totalorder %s37, 2
        %s729 = scalar_select %p728, %s37, 2
        %s730 = scalar_lea.vmem %s12, %s729
        %p731 = pneg %p345
        %p732 = pneg %p342
        %p733 = scmp.lt.s32.totalorder %s37, 2
        %s734 = scalar_select %p733, %s37, 2
        %s735 = scalar_lea.vmem %s13, %s734
        %p736 = pneg %p371
        %p737 = pneg %p368
        %p738 = scmp.lt.s32.totalorder %s37, 2
        %s739 = scalar_select %p738, %s37, 2
        %s740 = scalar_lea.vmem %s14, %s739
        %p741 = pneg %p397
        %p742 = pneg %p394
        %p743 = pneg %p418
        %p744 = pneg %p415
        %p745 = pneg %p439
        %p746 = pneg %p436
        %p747 = pneg %p460
        %p748 = pneg %p457
        %p749 = scmp.lt.s32.totalorder %s37, 2
        %s750 = scalar_select %p749, %s37, 2
        %s751 = scalar_lea.vmem %s6, %s750
        %p752 = scmp.lt.s32.totalorder %s37, 2
        %s753 = scalar_select %p752, %s37, 2
        %s754 = smul.addr %s753, 2
        %s755 = scalar_lea.vmem %s8, %s754
        %p756 = scmp.lt.s32.totalorder %s37, 2
        %s757 = scalar_select %p756, %s37, 2
        %s758 = scalar_lea.vmem %s10, %s757
        %p759 = scmp.lt.s32.totalorder %s37, 2
        %s760 = scalar_select %p759, %s37, 2
        %s761 = scalar_lea.vmem %s11, %s760
        %p762 = scmp.lt.s32.totalorder %s37, 2
        %s763 = scalar_select %p762, %s37, 2
        %s764 = scalar_lea.vmem %s12, %s763
        %p765 = scmp.lt.s32.totalorder %s37, 2
        %s766 = scalar_select %p765, %s37, 2
        %s767 = scalar_lea.vmem %s13, %s766
        %p768 = scmp.lt.s32.totalorder %s37, 2
        %s769 = scalar_select %p768, %s37, 2
        %s770 = scalar_lea.vmem %s14, %s769
        %p771 = scmp.eq.s32.totalorder %s37, 0
        // Predicated region
        $region113: #{tpu_custom_call.1} parent=87 // pred_check
          %p772 = pneg %p771
        $region114: #{tpu_custom_call.1} parent=87 // pred_check_branch
          %774 = sbr.rel (%p772) target = $region116
        $region115: #{tpu_custom_call.1} parent=87 // pred_region
          %v775 = vld [vmem:[#allocation3] sm:$0x3]
          %v776 = vld [vmem:[%s1] sm:$0xf]
          %v777 = vld [vmem:[%s1 + $0x4] sm:$0xf]
          %v778 = vld [vmem:[%s1 + $0x8] sm:$0xf]
          %v779 = vld [vmem:[%s1 + $0xc] sm:$0xf]
          %v780 = vld [vmem:[%s1 + $0x10] sm:$0xf]
          %v781 = vld [vmem:[%s1 + $0x14] sm:$0xf]
          %v782 = vld [vmem:[%s1 + $0x18] sm:$0xf]
          %v783 = vld [vmem:[%s1 + $0x1c] sm:$0xf]
          %v784 = vunpack.c.l.bf16 %v776
          %v785 = vunpack.c.l.bf16 %v777
          %v786 = vunpack.c.l.bf16 %v778
          %v787 = vunpack.c.l.bf16 %v779
          %v788 = vunpack.c.l.bf16 %v780
          %v789 = vunpack.c.l.bf16 %v781
          %v790 = vunpack.c.l.bf16 %v782
          %v791 = vunpack.c.l.bf16 %v783
          %v792 = vld [vmem:[#allocation6] sm:$0x1]
          %v794 = vlaneseq
          %v795 = vshrl.u32 %v794, 7
          %v796 = vsub.s32 0, %v795
          %v797 = vrot.slane %v792, %v796
          %vm799 = vcmask 523264
          %v801 = vsel %vm799, %v775, 0
          %803 = vmatprep.subr.mxu0 0.0
          %804 = vmatpush1.msra.mxu0 %v784
          %805 = vmatprep.subr.mxu0 0.0
          %806 = vmatpush1.msra.mxu0 %v785
          %807 = vmatprep.subr.mxu0 0.0
          %808 = vmatpush1.msra.mxu0 %v786
          %809 = vmatprep.subr.mxu0 0.0
          %810 = vmatpush1.msra.mxu0 %v787
          %811 = vmatprep.subr.mxu0 0.0
          %812 = vmatpush1.msra.mxu0 %v788
          %813 = vmatprep.subr.mxu0 0.0
          %814 = vmatpush1.msra.mxu0 %v789
          %815 = vmatprep.subr.mxu0 0.0
          %816 = vmatpush1.msra.mxu0 %v790
          %817 = vmatprep.subr.mxu0 0.0
          %818 = vmatpush1.msra.mxu0 %v791
          %819 = vmatprep.subr.mxu0 0.0
          %820 = vmatpush1.msra.mxu0 0.0
          %821 = vmatprep.subr.mxu0 0.0
          %822 = vmatpush1.msra.mxu0 0.0
          %823 = vmatprep.subr.mxu0 0.0
          %824 = vmatpush1.msra.mxu0 0.0
          %825 = vmatprep.subr.mxu0 0.0
          %826 = vmatpush1.msra.mxu0 0.0
          %827 = vmatprep.subr.mxu0 0.0
          %828 = vmatpush1.msra.mxu0 0.0
          %829 = vmatprep.subr.mxu0 0.0
          %830 = vmatpush1.msra.mxu0 0.0
          %831 = vmatprep.subr.mxu0 0.0
          %832 = vmatpush1.msra.mxu0 0.0
          %833 = vmatprep.subr.mxu0 0.0
          %834 = vmatpush1.msra.mxu0 0.0
          %835 = vmatprep.subr.mxu0 0.0
          %836 = vmatpush1.msra.mxu0 0.0
          %837 = vmatprep.subr.mxu0 0.0
          %838 = vmatpush1.msra.mxu0 0.0
          %839 = vmatprep.subr.mxu0 0.0
          %840 = vmatpush1.msra.mxu0 0.0
          %841 = vmatprep.subr.mxu0 0.0
          %842 = vmatpush1.msra.mxu0 0.0
          %843 = vmatprep.subr.mxu0 0.0
          %844 = vmatpush1.msra.mxu0 0.0
          %845 = vmatprep.subr.mxu0 0.0
          %846 = vmatpush1.msra.mxu0 0.0
          %847 = vmatprep.subr.mxu0 0.0
          %848 = vmatpush1.msra.mxu0 0.0
          %849 = vmatprep.subr.mxu0 0.0
          %850 = vmatpush1.msra.mxu0 0.0
          %851 = vmatprep.subr.mxu0 0.0
          %852 = vmatpush1.msra.mxu0 0.0
          %853 = vmatprep.subr.mxu0 0.0
          %854 = vmatpush1.msra.mxu0 0.0
          %855 = vmatprep.subr.mxu0 0.0
          %856 = vmatpush1.msra.mxu0 0.0
          %857 = vmatprep.subr.mxu0 0.0
          %858 = vmatpush1.msra.mxu0 0.0
          %859 = vmatprep.subr.mxu0 0.0
          %860 = vmatpush1.msra.mxu0 0.0
          %861 = vmatprep.subr.mxu0 0.0
          %862 = vmatpush1.msra.mxu0 0.0
          %863 = vmatprep.subr.mxu0 0.0
          %864 = vmatpush1.msra.mxu0 0.0
          %865 = vmatprep.subr.mxu0 0.0
          %866 = vmatpush1.msra.mxu0 0.0
          %867 = vmatprep.mubr.f32.mxu0 0.0
          %868 = vmatmul.mubr.f32.gmra.mrb[0].mxu0 %v801
          %v869 = vpop.f32.mrb[0].mxu0
          %v870 = vadd.f32 %v797, %v869
          %v871 = vpop.f32.mrb[0].mxu0
          %872 = vdwg.mxu0
          %v873 = vmax.f32 %v870, 0.0
          %v874 = vld [vmem:[%s3] sm:$0xf]
          %v875 = vld [vmem:[%s3 + $0x4] sm:$0xf]
          %v876 = vld [vmem:[%s3 + $0x8] sm:$0xf]
          %v877 = vld [vmem:[%s3 + $0xc] sm:$0xf]
          %v878 = vld [vmem:[%s3 + $0x10] sm:$0xf]
          %v879 = vld [vmem:[%s3 + $0x14] sm:$0xf]
          %v880 = vld [vmem:[%s3 + $0x18] sm:$0xf]
          %v881 = vld [vmem:[%s3 + $0x1c] sm:$0xf]
          %v882 = vld [vmem:[%s3 + $0x20] sm:$0xf]
          %v883 = vld [vmem:[%s3 + $0x24] sm:$0xf]
          %v884 = vld [vmem:[%s3 + $0x28] sm:$0xf]
          %v885 = vld [vmem:[%s3 + $0x2c] sm:$0xf]
          %v886 = vld [vmem:[%s3 + $0x30] sm:$0xf]
          %v887 = vld [vmem:[%s3 + $0x34] sm:$0xf]
          %v888 = vld [vmem:[%s3 + $0x38] sm:$0xf]
          %v889 = vld [vmem:[%s3 + $0x3c] sm:$0xf]
          %v890 = vunpack.c.l.bf16 %v874
          %v891 = vunpack.c.l.bf16 %v875
          %v892 = vunpack.c.l.bf16 %v876
          %v893 = vunpack.c.l.bf16 %v877
          %v894 = vunpack.c.l.bf16 %v878
          %v895 = vunpack.c.l.bf16 %v879
          %v896 = vunpack.c.l.bf16 %v880
          %v897 = vunpack.c.l.bf16 %v881
          %v898 = vunpack.c.l.bf16 %v882
          %v899 = vunpack.c.l.bf16 %v883
          %v900 = vunpack.c.l.bf16 %v884
          %v901 = vunpack.c.l.bf16 %v885
          %v902 = vunpack.c.l.bf16 %v886
          %v903 = vunpack.c.l.bf16 %v887
          %v904 = vunpack.c.l.bf16 %v888
          %v905 = vunpack.c.l.bf16 %v889
          %v906 = vld [vmem:[#allocation8] sm:$0x1]
          %v908 = vlaneseq
          %v909 = vshrl.u32 %v908, 7
          %v910 = vsub.s32 0, %v909
          %v911 = vrot.slane %v906, %v910
          %913 = vmatprep.subr.mxu0 0.0
          %914 = vmatpush1.msra.mxu0 %v890
          %915 = vmatprep.subr.mxu0 0.0
          %916 = vmatpush1.msra.mxu0 %v891
          %917 = vmatprep.subr.mxu0 0.0
          %918 = vmatpush1.msra.mxu0 %v892
          %919 = vmatprep.subr.mxu0 0.0
          %920 = vmatpush1.msra.mxu0 %v893
          %921 = vmatprep.subr.mxu0 0.0
          %922 = vmatpush1.msra.mxu0 %v894
          %923 = vmatprep.subr.mxu0 0.0
          %924 = vmatpush1.msra.mxu0 %v895
          %925 = vmatprep.subr.mxu0 0.0
          %926 = vmatpush1.msra.mxu0 %v896
          %927 = vmatprep.subr.mxu0 0.0
          %928 = vmatpush1.msra.mxu0 %v897
          %929 = vmatprep.subr.mxu0 0.0
          %930 = vmatpush1.msra.mxu0 %v898
          %931 = vmatprep.subr.mxu0 0.0
          %932 = vmatpush1.msra.mxu0 %v899
          %933 = vmatprep.subr.mxu0 0.0
          %934 = vmatpush1.msra.mxu0 %v900
          %935 = vmatprep.subr.mxu0 0.0
          %936 = vmatpush1.msra.mxu0 %v901
          %937 = vmatprep.subr.mxu0 0.0
          %938 = vmatpush1.msra.mxu0 %v902
          %939 = vmatprep.subr.mxu0 0.0
          %940 = vmatpush1.msra.mxu0 %v903
          %941 = vmatprep.subr.mxu0 0.0
          %942 = vmatpush1.msra.mxu0 %v904
          %943 = vmatprep.subr.mxu0 0.0
          %944 = vmatpush1.msra.mxu0 %v905
          %945 = vmatprep.subr.mxu0 0.0
          %946 = vmatpush1.msra.mxu0 0.0
          %947 = vmatprep.subr.mxu0 0.0
          %948 = vmatpush1.msra.mxu0 0.0
          %949 = vmatprep.subr.mxu0 0.0
          %950 = vmatpush1.msra.mxu0 0.0
          %951 = vmatprep.subr.mxu0 0.0
          %952 = vmatpush1.msra.mxu0 0.0
          %953 = vmatprep.subr.mxu0 0.0
          %954 = vmatpush1.msra.mxu0 0.0
          %955 = vmatprep.subr.mxu0 0.0
          %956 = vmatpush1.msra.mxu0 0.0
          %957 = vmatprep.subr.mxu0 0.0
          %958 = vmatpush1.msra.mxu0 0.0
          %959 = vmatprep.subr.mxu0 0.0
          %960 = vmatpush1.msra.mxu0 0.0
          %961 = vmatprep.subr.mxu0 0.0
          %962 = vmatpush1.msra.mxu0 0.0
          %963 = vmatprep.subr.mxu0 0.0
          %964 = vmatpush1.msra.mxu0 0.0
          %965 = vmatprep.subr.mxu0 0.0
          %966 = vmatpush1.msra.mxu0 0.0
          %967 = vmatprep.subr.mxu0 0.0
          %968 = vmatpush1.msra.mxu0 0.0
          %969 = vmatprep.subr.mxu0 0.0
          %970 = vmatpush1.msra.mxu0 0.0
          %971 = vmatprep.subr.mxu0 0.0
          %972 = vmatpush1.msra.mxu0 0.0
          %973 = vmatprep.subr.mxu0 0.0
          %974 = vmatpush1.msra.mxu0 0.0
          %975 = vmatprep.subr.mxu0 0.0
          %976 = vmatpush1.msra.mxu0 0.0
          %977 = vmatprep.mubr.f32.mxu0 0.0
          %978 = vmatmul.mubr.f32.gmra.mrb[0].mxu0 %v873
          %v979 = vpop.f32.mrb[0].mxu0
          %v980 = vadd.f32 %v911, %v979
          %v981 = vpop.f32.mrb[0].mxu0
          %982 = vdwg.mxu0
          %v983 = vmax.f32 %v980, 0.0
          %984 = vst [vmem:[#allocation2] sm:$0x3] %v983
        $region116: #{tpu_custom_call.1} parent=87 // pred_fallthru
          _
        %v985 = vld [vmem:[#allocation2] sm:$0x3]
        %v986 = vld [vmem:[%s653] sm:$0xf]
        %v987 = vld [vmem:[%s653 + $0x4] sm:$0xf]
        %v988 = vld [vmem:[%s653 + $0x8] sm:$0xf]
        %v989 = vld [vmem:[%s653 + $0xc] sm:$0xf]
        %v990 = vld [vmem:[%s653 + $0x10] sm:$0xf]
        %v991 = vld [vmem:[%s653 + $0x14] sm:$0xf]
        %v992 = vld [vmem:[%s653 + $0x18] sm:$0xf]
        %v993 = vld [vmem:[%s653 + $0x1c] sm:$0xf]
        %v994 = vld [vmem:[%s653 + $0x20] sm:$0xf]
        %v995 = vld [vmem:[%s653 + $0x24] sm:$0xf]
        %v996 = vld [vmem:[%s653 + $0x28] sm:$0xf]
        %v997 = vld [vmem:[%s653 + $0x2c] sm:$0xf]
        %v998 = vld [vmem:[%s653 + $0x30] sm:$0xf]
        %v999 = vld [vmem:[%s653 + $0x34] sm:$0xf]
        %v1000 = vld [vmem:[%s653 + $0x38] sm:$0xf]
        %v1001 = vld [vmem:[%s653 + $0x3c] sm:$0xf]
        %v1002 = vunpack.c.l.bf16 %v986
        %v1003 = vunpack.c.l.bf16 %v987
        %v1004 = vunpack.c.l.bf16 %v988
        %v1005 = vunpack.c.l.bf16 %v989
        %v1006 = vunpack.c.l.bf16 %v990
        %v1007 = vunpack.c.l.bf16 %v991
        %v1008 = vunpack.c.l.bf16 %v992
        %v1009 = vunpack.c.l.bf16 %v993
        %v1010 = vunpack.c.l.bf16 %v994
        %v1011 = vunpack.c.l.bf16 %v995
        %v1012 = vunpack.c.l.bf16 %v996
        %v1013 = vunpack.c.l.bf16 %v997
        %v1014 = vunpack.c.l.bf16 %v998
        %v1015 = vunpack.c.l.bf16 %v999
        %v1016 = vunpack.c.l.bf16 %v1000
        %v1017 = vunpack.c.l.bf16 %v1001
        %v1018 = vld [vmem:[%s751] sm:$0x1]
        %v1020 = vlaneseq
        %v1021 = vshrl.u32 %v1020, 7
        %v1022 = vsub.s32 0, %v1021
        %v1023 = vrot.slane %v1018, %v1022
        %1025 = vmatprep.subr.mxu0 0.0
        %1026 = vmatpush1.msra.mxu0 %v1002
        %1027 = vmatprep.subr.mxu0 0.0
        %1028 = vmatpush1.msra.mxu0 %v1003
        %1029 = vmatprep.subr.mxu0 0.0
        %1030 = vmatpush1.msra.mxu0 %v1004
        %1031 = vmatprep.subr.mxu0 0.0
        %1032 = vmatpush1.msra.mxu0 %v1005
        %1033 = vmatprep.subr.mxu0 0.0
        %1034 = vmatpush1.msra.mxu0 %v1006
        %1035 = vmatprep.subr.mxu0 0.0
        %1036 = vmatpush1.msra.mxu0 %v1007
        %1037 = vmatprep.subr.mxu0 0.0
        %1038 = vmatpush1.msra.mxu0 %v1008
        %1039 = vmatprep.subr.mxu0 0.0
        %1040 = vmatpush1.msra.mxu0 %v1009
        %1041 = vmatprep.subr.mxu0 0.0
        %1042 = vmatpush1.msra.mxu0 %v1010
        %1043 = vmatprep.subr.mxu0 0.0
        %1044 = vmatpush1.msra.mxu0 %v1011
        %1045 = vmatprep.subr.mxu0 0.0
        %1046 = vmatpush1.msra.mxu0 %v1012
        %1047 = vmatprep.subr.mxu0 0.0
        %1048 = vmatpush1.msra.mxu0 %v1013
        %1049 = vmatprep.subr.mxu0 0.0
        %1050 = vmatpush1.msra.mxu0 %v1014
        %1051 = vmatprep.subr.mxu0 0.0
        %1052 = vmatpush1.msra.mxu0 %v1015
        %1053 = vmatprep.subr.mxu0 0.0
        %1054 = vmatpush1.msra.mxu0 %v1016
        %1055 = vmatprep.subr.mxu0 0.0
        %1056 = vmatpush1.msra.mxu0 %v1017
        %1057 = vmatprep.subr.mxu0 0.0
        %1058 = vmatpush1.msra.mxu0 0.0
        %1059 = vmatprep.subr.mxu0 0.0
        %1060 = vmatpush1.msra.mxu0 0.0
        %1061 = vmatprep.subr.mxu0 0.0
        %1062 = vmatpush1.msra.mxu0 0.0
        %1063 = vmatprep.subr.mxu0 0.0
        %1064 = vmatpush1.msra.mxu0 0.0
        %1065 = vmatprep.subr.mxu0 0.0
        %1066 = vmatpush1.msra.mxu0 0.0
        %1067 = vmatprep.subr.mxu0 0.0
        %1068 = vmatpush1.msra.mxu0 0.0
        %1069 = vmatprep.subr.mxu0 0.0
        %1070 = vmatpush1.msra.mxu0 0.0
        %1071 = vmatprep.subr.mxu0 0.0
        %1072 = vmatpush1.msra.mxu0 0.0
        %1073 = vmatprep.subr.mxu0 0.0
        %1074 = vmatpush1.msra.mxu0 0.0
        %1075 = vmatprep.subr.mxu0 0.0
        %1076 = vmatpush1.msra.mxu0 0.0
        %1077 = vmatprep.subr.mxu0 0.0
        %1078 = vmatpush1.msra.mxu0 0.0
        %1079 = vmatprep.subr.mxu0 0.0
        %1080 = vmatpush1.msra.mxu0 0.0
        %1081 = vmatprep.subr.mxu0 0.0
        %1082 = vmatpush1.msra.mxu0 0.0
        %1083 = vmatprep.subr.mxu0 0.0
        %1084 = vmatpush1.msra.mxu0 0.0
        %1085 = vmatprep.subr.mxu0 0.0
        %1086 = vmatpush1.msra.mxu0 0.0
        %1087 = vmatprep.subr.mxu0 0.0
        %1088 = vmatpush1.msra.mxu0 0.0
        %1089 = vmatprep.mubr.f32.mxu0 0.0
        %1090 = vmatmul.mubr.f32.gmra.mrb[0].mxu0 %v985
        %v1091 = vpop.f32.mrb[0].mxu0
        %v1092 = vadd.f32 %v1023, %v1091
        %v1093 = vpop.f32.mrb[0].mxu0
        %1094 = vdwg.mxu0
        %v1095 = vadd.f32 %v985, %v1092
        %v1096 = vld [vmem:[%s761] sm:$0x1]
        %v1097 = vld [vmem:[%s764] sm:$0x1]
        %vm1098 = vcmask 1041408
        %v1099 = vsel %vm1098, %v1095, 0.0
        %1100 = vadd.xlane.f32.xlu0 %v1099
        %v1101 = vpop.xlane.xlu0 %1100
        %v1102 = vrcp.pop 128.0
        %v1103 = vmul.f32 %v1101, %v1102
        %v1104 = vsub.f32 %v1095, %v1103
        %v1105 = vmul.f32 %v1104, %v1104
        %v1106 = vsel %vm1098, %v1105, 0.0
        %1107 = vadd.xlane.f32.xlu0 %v1106
        %v1108 = vpop.xlane.xlu0 %1107
        %v1109 = vmul.f32 %v1108, %v1102
        %v1110 = vadd.f32 %v1109, 1e-05
        %v1111 = vrsqrt.pop %v1110
        %v1112 = vmul.f32 %v1104, %v1111
        %v1114 = vlaneseq
        %v1115 = vshrl.u32 %v1114, 7
        %v1116 = vsub.s32 0, %v1115
        %v1117 = vrot.slane %v1096, %v1116
        %v1119 = vmul.f32 %v1112, %v1117
        %v1121 = vlaneseq
        %v1122 = vshrl.u32 %v1121, 7
        %v1123 = vsub.s32 0, %v1122
        %v1124 = vrot.slane %v1097, %v1123
        %v1126 = vadd.f32 %v1119, %v1124
        %v1127 = vld [vmem:[%s662] sm:$0xff]
        %v1128 = vld [vmem:[%s662 + $0x8] sm:$0xff]
        %v1129 = vld [vmem:[%s662 + $0x10] sm:$0xff]
        %v1130 = vld [vmem:[%s662 + $0x18] sm:$0xff]
        %v1131 = vld [vmem:[%s662 + $0x20] sm:$0xff]
        %v1132 = vld [vmem:[%s662 + $0x28] sm:$0xff]
        %v1133 = vld [vmem:[%s662 + $0x30] sm:$0xff]
        %v1134 = vld [vmem:[%s662 + $0x38] sm:$0xff]
        %v1135 = vld [vmem:[%s662 + $0x40] sm:$0xff]
        %v1136 = vld [vmem:[%s662 + $0x48] sm:$0xff]
        %v1137 = vld [vmem:[%s662 + $0x50] sm:$0xff]
        %v1138 = vld [vmem:[%s662 + $0x58] sm:$0xff]
        %v1139 = vld [vmem:[%s662 + $0x60] sm:$0xff]
        %v1140 = vld [vmem:[%s662 + $0x68] sm:$0xff]
        %v1141 = vld [vmem:[%s662 + $0x70] sm:$0xff]
        %v1142 = vld [vmem:[%s662 + $0x78] sm:$0xff]
        %v1143 = vunpack.c.l.bf16 %v1127
        %v1144 = vunpack.c.h.bf16 %v1127
        %v1145 = vunpack.c.l.bf16 %v1128
        %v1146 = vunpack.c.h.bf16 %v1128
        %v1147 = vunpack.c.l.bf16 %v1129
        %v1148 = vunpack.c.h.bf16 %v1129
        %v1149 = vunpack.c.l.bf16 %v1130
        %v1150 = vunpack.c.h.bf16 %v1130
        %v1151 = vunpack.c.l.bf16 %v1131
        %v1152 = vunpack.c.h.bf16 %v1131
        %v1153 = vunpack.c.l.bf16 %v1132
        %v1154 = vunpack.c.h.bf16 %v1132
        %v1155 = vunpack.c.l.bf16 %v1133
        %v1156 = vunpack.c.h.bf16 %v1133
        %v1157 = vunpack.c.l.bf16 %v1134
        %v1158 = vunpack.c.h.bf16 %v1134
        %v1159 = vunpack.c.l.bf16 %v1135
        %v1160 = vunpack.c.h.bf16 %v1135
        %v1161 = vunpack.c.l.bf16 %v1136
        %v1162 = vunpack.c.h.bf16 %v1136
        %v1163 = vunpack.c.l.bf16 %v1137
        %v1164 = vunpack.c.h.bf16 %v1137
        %v1165 = vunpack.c.l.bf16 %v1138
        %v1166 = vunpack.c.h.bf16 %v1138
        %v1167 = vunpack.c.l.bf16 %v1139
        %v1168 = vunpack.c.h.bf16 %v1139
        %v1169 = vunpack.c.l.bf16 %v1140
        %v1170 = vunpack.c.h.bf16 %v1140
        %v1171 = vunpack.c.l.bf16 %v1141
        %v1172 = vunpack.c.h.bf16 %v1141
        %v1173 = vunpack.c.l.bf16 %v1142
        %v1174 = vunpack.c.h.bf16 %v1142
        %v1175 = vld [vmem:[%s755] sm:$0x3]
        %v1177 = vlaneseq
        %v1178 = vshrl.u32 %v1177, 7
        %v1179 = vsub.s32 0, %v1178
        %v1180 = vrot.slane %v1175, %v1179
        %v1181 = vlaneseq
        %v1182 = vshrl.u32 %v1181, 7
        %v1183 = vsub.s32 1, %v1182
        %v1184 = vrot.slane %v1175, %v1183
        %1187 = vmatprep.subr.mxu0 %v1144
        %1188 = vmatpush1.msra.mxu0 %v1143
        %1189 = vmatprep.subr.mxu0 %v1146
        %1190 = vmatpush1.msra.mxu0 %v1145
        %1191 = vmatprep.subr.mxu0 %v1148
        %1192 = vmatpush1.msra.mxu0 %v1147
        %1193 = vmatprep.subr.mxu0 %v1150
        %1194 = vmatpush1.msra.mxu0 %v1149
        %1195 = vmatprep.subr.mxu0 %v1152
        %1196 = vmatpush1.msra.mxu0 %v1151
        %1197 = vmatprep.subr.mxu0 %v1154
        %1198 = vmatpush1.msra.mxu0 %v1153
        %1199 = vmatprep.subr.mxu0 %v1156
        %1200 = vmatpush1.msra.mxu0 %v1155
        %1201 = vmatprep.subr.mxu0 %v1158
        %1202 = vmatpush1.msra.mxu0 %v1157
        %1203 = vmatprep.subr.mxu0 %v1160
        %1204 = vmatpush1.msra.mxu0 %v1159
        %1205 = vmatprep.subr.mxu0 %v1162
        %1206 = vmatpush1.msra.mxu0 %v1161
        %1207 = vmatprep.subr.mxu0 %v1164
        %1208 = vmatpush1.msra.mxu0 %v1163
        %1209 = vmatprep.subr.mxu0 %v1166
        %1210 = vmatpush1.msra.mxu0 %v1165
        %1211 = vmatprep.subr.mxu0 %v1168
        %1212 = vmatpush1.msra.mxu0 %v1167
        %1213 = vmatprep.subr.mxu0 %v1170
        %1214 = vmatpush1.msra.mxu0 %v1169
        %1215 = vmatprep.subr.mxu0 %v1172
        %1216 = vmatpush1.msra.mxu0 %v1171
        %1217 = vmatprep.subr.mxu0 %v1174
        %1218 = vmatpush1.msra.mxu0 %v1173
        %1219 = vmatprep.subr.mxu0 0.0
        %1220 = vmatpush1.msra.mxu0 0.0
        %1221 = vmatprep.subr.mxu0 0.0
        %1222 = vmatpush1.msra.mxu0 0.0
        %1223 = vmatprep.subr.mxu0 0.0
        %1224 = vmatpush1.msra.mxu0 0.0
        %1225 = vmatprep.subr.mxu0 0.0
        %1226 = vmatpush1.msra.mxu0 0.0
        %1227 = vmatprep.subr.mxu0 0.0
        %1228 = vmatpush1.msra.mxu0 0.0
        %1229 = vmatprep.subr.mxu0 0.0
        %1230 = vmatpush1.msra.mxu0 0.0
        %1231 = vmatprep.subr.mxu0 0.0
        %1232 = vmatpush1.msra.mxu0 0.0
        %1233 = vmatprep.subr.mxu0 0.0
        %1234 = vmatpush1.msra.mxu0 0.0
        %1235 = vmatprep.subr.mxu0 0.0
        %1236 = vmatpush1.msra.mxu0 0.0
        %1237 = vmatprep.subr.mxu0 0.0
        %1238 = vmatpush1.msra.mxu0 0.0
        %1239 = vmatprep.subr.mxu0 0.0
        %1240 = vmatpush1.msra.mxu0 0.0
        %1241 = vmatprep.subr.mxu0 0.0
        %1242 = vmatpush1.msra.mxu0 0.0
        %1243 = vmatprep.subr.mxu0 0.0
        %1244 = vmatpush1.msra.mxu0 0.0
        %1245 = vmatprep.subr.mxu0 0.0
        %1246 = vmatpush1.msra.mxu0 0.0
        %1247 = vmatprep.subr.mxu0 0.0
        %1248 = vmatpush1.msra.mxu0 0.0
        %1249 = vmatprep.subr.mxu0 0.0
        %1250 = vmatpush1.msra.mxu0 0.0
        %1251 = vmatprep.mubr.f32.mxu0 0.0
        %1252 = vmatmul.mubr.f32.gmra.mrb[0].mxu0 %v1126
        %v1253 = vpop.f32.mrb[0].mxu0
        %v1254 = vadd.f32 %v1180, %v1253
        %v1255 = vpop.f32.mrb[0].mxu0
        %v1256 = vadd.f32 %v1184, %v1255
        %1257 = vdwg.mxu0
        %v1258 = vmax.f32 %v1254, 0.0
        %v1259 = vmax.f32 %v1256, 0.0
        %v1260 = vld [vmem:[%s671] sm:$0xf]
        %v1261 = vld [vmem:[%s671 + $0x4] sm:$0xf]
        %v1262 = vld [vmem:[%s671 + $0x8] sm:$0xf]
        %v1263 = vld [vmem:[%s671 + $0xc] sm:$0xf]
        %v1264 = vld [vmem:[%s671 + $0x10] sm:$0xf]
        %v1265 = vld [vmem:[%s671 + $0x14] sm:$0xf]
        %v1266 = vld [vmem:[%s671 + $0x18] sm:$0xf]
        %v1267 = vld [vmem:[%s671 + $0x1c] sm:$0xf]
        %v1268 = vld [vmem:[%s671 + $0x20] sm:$0xf]
        %v1269 = vld [vmem:[%s671 + $0x24] sm:$0xf]
        %v1270 = vld [vmem:[%s671 + $0x28] sm:$0xf]
        %v1271 = vld [vmem:[%s671 + $0x2c] sm:$0xf]
        %v1272 = vld [vmem:[%s671 + $0x30] sm:$0xf]
        %v1273 = vld [vmem:[%s671 + $0x34] sm:$0xf]
        %v1274 = vld [vmem:[%s671 + $0x38] sm:$0xf]
        %v1275 = vld [vmem:[%s671 + $0x3c] sm:$0xf]
        %v1276 = vld [vmem:[%s671 + $0x40] sm:$0xf]
        %v1277 = vld [vmem:[%s671 + $0x44] sm:$0xf]
        %v1278 = vld [vmem:[%s671 + $0x48] sm:$0xf]
        %v1279 = vld [vmem:[%s671 + $0x4c] sm:$0xf]
        %v1280 = vld [vmem:[%s671 + $0x50] sm:$0xf]
        %v1281 = vld [vmem:[%s671 + $0x54] sm:$0xf]
        %v1282 = vld [vmem:[%s671 + $0x58] sm:$0xf]
        %v1283 = vld [vmem:[%s671 + $0x5c] sm:$0xf]
        %v1284 = vld [vmem:[%s671 + $0x60] sm:$0xf]
        %v1285 = vld [vmem:[%s671 + $0x64] sm:$0xf]
        %v1286 = vld [vmem:[%s671 + $0x68] sm:$0xf]
        %v1287 = vld [vmem:[%s671 + $0x6c] sm:$0xf]
        %v1288 = vld [vmem:[%s671 + $0x70] sm:$0xf]
        %v1289 = vld [vmem:[%s671 + $0x74] sm:$0xf]
        %v1290 = vld [vmem:[%s671 + $0x78] sm:$0xf]
        %v1291 = vld [vmem:[%s671 + $0x7c] sm:$0xf]
        %v1292 = vunpack.c.l.bf16 %v1260
        %v1293 = vunpack.c.l.bf16 %v1261
        %v1294 = vunpack.c.l.bf16 %v1262
        %v1295 = vunpack.c.l.bf16 %v1263
        %v1296 = vunpack.c.l.bf16 %v1264
        %v1297 = vunpack.c.l.bf16 %v1265
        %v1298 = vunpack.c.l.bf16 %v1266
        %v1299 = vunpack.c.l.bf16 %v1267
        %v1300 = vunpack.c.l.bf16 %v1268
        %v1301 = vunpack.c.l.bf16 %v1269
        %v1302 = vunpack.c.l.bf16 %v1270
        %v1303 = vunpack.c.l.bf16 %v1271
        %v1304 = vunpack.c.l.bf16 %v1272
        %v1305 = vunpack.c.l.bf16 %v1273
        %v1306 = vunpack.c.l.bf16 %v1274
        %v1307 = vunpack.c.l.bf16 %v1275
        %v1308 = vunpack.c.l.bf16 %v1276
        %v1309 = vunpack.c.l.bf16 %v1277
        %v1310 = vunpack.c.l.bf16 %v1278
        %v1311 = vunpack.c.l.bf16 %v1279
        %v1312 = vunpack.c.l.bf16 %v1280
        %v1313 = vunpack.c.l.bf16 %v1281
        %v1314 = vunpack.c.l.bf16 %v1282
        %v1315 = vunpack.c.l.bf16 %v1283
        %v1316 = vunpack.c.l.bf16 %v1284
        %v1317 = vunpack.c.l.bf16 %v1285
        %v1318 = vunpack.c.l.bf16 %v1286
        %v1319 = vunpack.c.l.bf16 %v1287
        %v1320 = vunpack.c.l.bf16 %v1288
        %v1321 = vunpack.c.l.bf16 %v1289
        %v1322 = vunpack.c.l.bf16 %v1290
        %v1323 = vunpack.c.l.bf16 %v1291
        %v1324 = vld [vmem:[%s758] sm:$0x1]
        %v1326 = vlaneseq
        %v1327 = vshrl.u32 %v1326, 7
        %v1328 = vsub.s32 0, %v1327
        %v1329 = vrot.slane %v1324, %v1328
        %1331 = vmatprep.subr.mxu0 0.0
        %1332 = vmatpush1.msra.mxu0 %v1292
        %1333 = vmatprep.subr.mxu0 0.0
        %1334 = vmatpush1.msra.mxu0 %v1293
        %1335 = vmatprep.subr.mxu0 0.0
        %1336 = vmatpush1.msra.mxu0 %v1294
        %1337 = vmatprep.subr.mxu0 0.0
        %1338 = vmatpush1.msra.mxu0 %v1295
        %1339 = vmatprep.subr.mxu0 0.0
        %1340 = vmatpush1.msra.mxu0 %v1296
        %1341 = vmatprep.subr.mxu0 0.0
        %1342 = vmatpush1.msra.mxu0 %v1297
        %1343 = vmatprep.subr.mxu0 0.0
        %1344 = vmatpush1.msra.mxu0 %v1298
        %1345 = vmatprep.subr.mxu0 0.0
        %1346 = vmatpush1.msra.mxu0 %v1299
        %1347 = vmatprep.subr.mxu0 0.0
        %1348 = vmatpush1.msra.mxu0 %v1300
        %1349 = vmatprep.subr.mxu0 0.0
        %1350 = vmatpush1.msra.mxu0 %v1301
        %1351 = vmatprep.subr.mxu0 0.0
        %1352 = vmatpush1.msra.mxu0 %v1302
        %1353 = vmatprep.subr.mxu0 0.0
        %1354 = vmatpush1.msra.mxu0 %v1303
        %1355 = vmatprep.subr.mxu0 0.0
        %1356 = vmatpush1.msra.mxu0 %v1304
        %1357 = vmatprep.subr.mxu0 0.0
        %1358 = vmatpush1.msra.mxu0 %v1305
        %1359 = vmatprep.subr.mxu0 0.0
        %1360 = vmatpush1.msra.mxu0 %v1306
        %1361 = vmatprep.subr.mxu0 0.0
        %1362 = vmatpush1.msra.mxu0 %v1307
        %1363 = vmatprep.subr.mxu0 0.0
        %1364 = vmatpush1.msra.mxu0 %v1308
        %1365 = vmatprep.subr.mxu0 0.0
        %1366 = vmatpush1.msra.mxu0 %v1309
        %1367 = vmatprep.subr.mxu0 0.0
        %1368 = vmatpush1.msra.mxu0 %v1310
        %1369 = vmatprep.subr.mxu0 0.0
        %1370 = vmatpush1.msra.mxu0 %v1311
        %1371 = vmatprep.subr.mxu0 0.0
        %1372 = vmatpush1.msra.mxu0 %v1312
        %1373 = vmatprep.subr.mxu0 0.0
        %1374 = vmatpush1.msra.mxu0 %v1313
        %1375 = vmatprep.subr.mxu0 0.0
        %1376 = vmatpush1.msra.mxu0 %v1314
        %1377 = vmatprep.subr.mxu0 0.0
        %1378 = vmatpush1.msra.mxu0 %v1315
        %1379 = vmatprep.subr.mxu0 0.0
        %1380 = vmatpush1.msra.mxu0 %v1316
        %1381 = vmatprep.subr.mxu0 0.0
        %1382 = vmatpush1.msra.mxu0 %v1317
        %1383 = vmatprep.subr.mxu0 0.0
        %1384 = vmatpush1.msra.mxu0 %v1318
        %1385 = vmatprep.subr.mxu0 0.0
        %1386 = vmatpush1.msra.mxu0 %v1319
        %1387 = vmatprep.subr.mxu0 0.0
        %1388 = vmatpush1.msra.mxu0 %v1320
        %1389 = vmatprep.subr.mxu0 0.0
        %1390 = vmatpush1.msra.mxu0 %v1321
        %1391 = vmatprep.subr.mxu0 0.0
        %1392 = vmatpush1.msra.mxu0 %v1322
        %1393 = vmatprep.subr.mxu0 0.0
        %1394 = vmatpush1.msra.mxu0 %v1323
        %1395 = vmatprep.mubr.f32.mxu0 %v1259
        %1396 = vmatmul.mubr.f32.gmra.mrb[0].mxu0 %v1258
        %v1397 = vpop.f32.mrb[0].mxu0
        %v1398 = vadd.f32 %v1329, %v1397
        %v1399 = vpop.f32.mrb[0].mxu0
        %1400 = vdwg.mxu0
        %v1401 = vadd.f32 %v1126, %v1398
        %v1402 = vld [vmem:[%s767] sm:$0x1]
        %v1403 = vld [vmem:[%s770] sm:$0x1]
        %v1404 = vsel %vm1098, %v1401, 0.0
        %1405 = vadd.xlane.f32.xlu0 %v1404
        %v1406 = vpop.xlane.xlu0 %1405
        %v1407 = vmul.f32 %v1406, %v1102
        %v1408 = vsub.f32 %v1401, %v1407
        %v1409 = vmul.f32 %v1408, %v1408
        %v1410 = vsel %vm1098, %v1409, 0.0
        %1411 = vadd.xlane.f32.xlu0 %v1410
        %v1412 = vpop.xlane.xlu0 %1411
        %v1413 = vmul.f32 %v1412, %v1102
        %v1414 = vadd.f32 %v1413, 1e-05
        %v1415 = vrsqrt.pop %v1414
        %v1416 = vmul.f32 %v1408, %v1415
        %v1418 = vlaneseq
        %v1419 = vshrl.u32 %v1418, 7
        %v1420 = vsub.s32 0, %v1419
        %v1421 = vrot.slane %v1402, %v1420
        %v1423 = vmul.f32 %v1416, %v1421
        %v1425 = vlaneseq
        %v1426 = vshrl.u32 %v1425, 7
        %v1427 = vsub.s32 0, %v1426
        %v1428 = vrot.slane %v1403, %v1427
        %v1430 = vadd.f32 %v1423, %v1428
        %1431 = vst [vmem:[#allocation2] sm:$0x3] %v1430
        %p1432 = scmp.eq.s32.totalorder %s37, 2
        // Predicated region
        $region117: #{tpu_custom_call.1} parent=87 // pred_check
          %p1433 = pneg %p1432
        $region118: #{tpu_custom_call.1} parent=87 // pred_check_branch
          %1435 = sbr.rel (%p1433) target = $region120
        $region119: #{tpu_custom_call.1} parent=87 // pred_region
          %v1436 = vld [vmem:[%s15] sm:$0xf]
          %v1437 = vld [vmem:[%s15 + $0x4] sm:$0xf]
          %v1438 = vld [vmem:[%s15 + $0x8] sm:$0xf]
          %v1439 = vld [vmem:[%s15 + $0xc] sm:$0xf]
          %v1440 = vld [vmem:[%s15 + $0x10] sm:$0xf]
          %v1441 = vld [vmem:[%s15 + $0x14] sm:$0xf]
          %v1442 = vld [vmem:[%s15 + $0x18] sm:$0xf]
          %v1443 = vld [vmem:[%s15 + $0x1c] sm:$0xf]
          %v1444 = vld [vmem:[%s15 + $0x20] sm:$0xf]
          %v1445 = vld [vmem:[%s15 + $0x24] sm:$0xf]
          %v1446 = vld [vmem:[%s15 + $0x28] sm:$0xf]
          %v1447 = vld [vmem:[%s15 + $0x2c] sm:$0xf]
          %v1448 = vld [vmem:[%s15 + $0x30] sm:$0xf]
          %v1449 = vld [vmem:[%s15 + $0x34] sm:$0xf]
          %v1450 = vld [vmem:[%s15 + $0x38] sm:$0xf]
          %v1451 = vld [vmem:[%s15 + $0x3c] sm:$0xf]
          %v1452 = vunpack.c.l.bf16 %v1436
          %v1453 = vunpack.c.l.bf16 %v1437
          %v1454 = vunpack.c.l.bf16 %v1438
          %v1455 = vunpack.c.l.bf16 %v1439
          %v1456 = vunpack.c.l.bf16 %v1440
          %v1457 = vunpack.c.l.bf16 %v1441
          %v1458 = vunpack.c.l.bf16 %v1442
          %v1459 = vunpack.c.l.bf16 %v1443
          %v1460 = vunpack.c.l.bf16 %v1444
          %v1461 = vunpack.c.l.bf16 %v1445
          %v1462 = vunpack.c.l.bf16 %v1446
          %v1463 = vunpack.c.l.bf16 %v1447
          %v1464 = vunpack.c.l.bf16 %v1448
          %v1465 = vunpack.c.l.bf16 %v1449
          %v1466 = vunpack.c.l.bf16 %v1450
          %v1467 = vunpack.c.l.bf16 %v1451
          %v1468 = vld [vmem:[%s16] sm:$0x1]
          %v1470 = vlaneseq
          %v1471 = vshrl.u32 %v1470, 7
          %v1472 = vsub.s32 0, %v1471
          %v1473 = vrot.slane %v1468, %v1472
          %1475 = vmatprep.subr.mxu0 0.0
          %1476 = vmatpush1.msra.mxu0 %v1452
          %1477 = vmatprep.subr.mxu0 0.0
          %1478 = vmatpush1.msra.mxu0 %v1453
          %1479 = vmatprep.subr.mxu0 0.0
          %1480 = vmatpush1.msra.mxu0 %v1454
          %1481 = vmatprep.subr.mxu0 0.0
          %1482 = vmatpush1.msra.mxu0 %v1455
          %1483 = vmatprep.subr.mxu0 0.0
          %1484 = vmatpush1.msra.mxu0 %v1456
          %1485 = vmatprep.subr.mxu0 0.0
          %1486 = vmatpush1.msra.mxu0 %v1457
          %1487 = vmatprep.subr.mxu0 0.0
          %1488 = vmatpush1.msra.mxu0 %v1458
          %1489 = vmatprep.subr.mxu0 0.0
          %1490 = vmatpush1.msra.mxu0 %v1459
          %1491 = vmatprep.subr.mxu0 0.0
          %1492 = vmatpush1.msra.mxu0 %v1460
          %1493 = vmatprep.subr.mxu0 0.0
          %1494 = vmatpush1.msra.mxu0 %v1461
          %1495 = vmatprep.subr.mxu0 0.0
          %1496 = vmatpush1.msra.mxu0 %v1462
          %1497 = vmatprep.subr.mxu0 0.0
          %1498 = vmatpush1.msra.mxu0 %v1463
          %1499 = vmatprep.subr.mxu0 0.0
          %1500 = vmatpush1.msra.mxu0 %v1464
          %1501 = vmatprep.subr.mxu0 0.0
          %1502 = vmatpush1.msra.mxu0 %v1465
          %1503 = vmatprep.subr.mxu0 0.0
          %1504 = vmatpush1.msra.mxu0 %v1466
          %1505 = vmatprep.subr.mxu0 0.0
          %1506 = vmatpush1.msra.mxu0 %v1467
          %1507 = vmatprep.subr.mxu0 0.0
          %1508 = vmatpush1.msra.mxu0 0.0
          %1509 = vmatprep.subr.mxu0 0.0
          %1510 = vmatpush1.msra.mxu0 0.0
          %1511 = vmatprep.subr.mxu0 0.0
          %1512 = vmatpush1.msra.mxu0 0.0
          %1513 = vmatprep.subr.mxu0 0.0
          %1514 = vmatpush1.msra.mxu0 0.0
          %1515 = vmatprep.subr.mxu0 0.0
          %1516 = vmatpush1.msra.mxu0 0.0
          %1517 = vmatprep.subr.mxu0 0.0
          %1518 = vmatpush1.msra.mxu0 0.0
          %1519 = vmatprep.subr.mxu0 0.0
          %1520 = vmatpush1.msra.mxu0 0.0
          %1521 = vmatprep.subr.mxu0 0.0
          %1522 = vmatpush1.msra.mxu0 0.0
          %1523 = vmatprep.subr.mxu0 0.0
          %1524 = vmatpush1.msra.mxu0 0.0
          %1525 = vmatprep.subr.mxu0 0.0
          %1526 = vmatpush1.msra.mxu0 0.0
          %1527 = vmatprep.subr.mxu0 0.0
          %1528 = vmatpush1.msra.mxu0 0.0
          %1529 = vmatprep.subr.mxu0 0.0
          %1530 = vmatpush1.msra.mxu0 0.0
          %1531 = vmatprep.subr.mxu0 0.0
          %1532 = vmatpush1.msra.mxu0 0.0
          %1533 = vmatprep.subr.mxu0 0.0
          %1534 = vmatpush1.msra.mxu0 0.0
          %1535 = vmatprep.subr.mxu0 0.0
          %1536 = vmatpush1.msra.mxu0 0.0
          %1537 = vmatprep.subr.mxu0 0.0
          %1538 = vmatpush1.msra.mxu0 0.0
          %1539 = vmatprep.mubr.f32.mxu0 0.0
          %1540 = vmatmul.mubr.f32.gmra.mrb[0].mxu0 %v1430
          %v1541 = vpop.f32.mrb[0].mxu0
          %v1542 = vadd.f32 %v1473, %v1541
          %v1543 = vpop.f32.mrb[0].mxu0
          %1544 = vdwg.mxu0
          %v1545 = vmax.f32 %v1542, 0.0
          %vm1546 = vcmask 517120
          %1547 = vst.msk [vmem:[#allocation14] sm:$0x3] %vm1546, %v1545
        $region120: #{tpu_custom_call.1} parent=87 // pred_fallthru
          _
        // Predicated region
        $region121: #{tpu_custom_call.1} parent=87 // pred_check
          %p1548 = pneg %p457
        $region122: #{tpu_custom_call.1} parent=87 // pred_check_branch
          %1550 = sbr.rel (%p1548) target = $region124
        $region123: #{tpu_custom_call.1} parent=87 // pred_region
          %s1552 = ssub.s32 32, 32
          %1553 = vsyncadd [#allocation5], %s1552
          %s1555 = sshll.u32 [#allocation14], 4
          %s1556 = int_to_ptr.vmem [resolvable:$true] %s1555
          %1558 = dma.vmem_to_hbm [thread:$0]  %s1556, 32, %s17, [#allocation5]
        $region124: #{tpu_custom_call.1} parent=87 // pred_fallthru
          _
        // Predicated region
        $region125: #{tpu_custom_call.1} parent=87 // pred_check
          %p1559 = pneg %p457
        $region126: #{tpu_custom_call.1} parent=87 // pred_check_branch
          %1561 = sbr.rel (%p1559) target = $region128
        $region127: #{tpu_custom_call.1} parent=87 // pred_region
          %1562 = dma.done [#allocation5], 32
        $region128: #{tpu_custom_call.1} parent=87 // pred_fallthru
          _
      $region88: #{tpu_custom_call.1} parent=5 // pred_fallthru
        _
      %p1563 = scmp.le.s32.totalorder 2, %s32
      // Predicated region
      $region129: #{tpu_custom_call.1} parent=5 // pred_check
        %p1564 = pneg %p1563
      $region130: #{tpu_custom_call.1} parent=5 // pred_check_branch
        %1566 = sbr.rel (%p1564) target = $region132
      $region131: #{tpu_custom_call.1} parent=5 // pred_region
        %s1567 = ssub.s32 %s32, 2
      $region132: #{tpu_custom_call.1} parent=5 // pred_fallthru
        _
    $region6: #{tpu_custom_call.1} parent=1 // loop_footer
      %s36 = sadd.s32 1, %s32
    $region7: #{tpu_custom_call.1} parent=1 // loop_footer_branch
      %31 = sbr.rel target = $region3
    $region8: #{tpu_custom_call.1} parent=1 // loop_exit
      _
    %1568 = vsyncpa [#allocation4], 1
    %s1569 = scalar_lea.sflag [#allocation4], 1
    %1570 = vsyncpa %s1569, 1
    %1571 = vsyncpa [#allocation7], 1
    %1572 = vsyncpa [#allocation10], 1
    %s1573 = scalar_lea.sflag [#allocation10], 1
    %1574 = vsyncpa %s1573, 1
    %1575 = vsyncpa [#allocation13], 1
    %s1576 = scalar_lea.sflag [#allocation13], 1
    %1577 = vsyncpa %s1576, 1
    %1578 = vsyncpa [#allocation5], 1
    %s1579 = scalar_lea.sflag [#allocation5], 1
    %1580 = vsyncpa %s1579, 1

</llo_original>
